<compile_context>
chip_gen: v6e
topology: v6e:2x2x1
jax: 0.10.0
libtpu: 0.0.40
codegen_flags: <defaults>
</compile_context>

<pallas_src>
import functools

import numpy as np
import jax
import jax.numpy as jnp
from jax import lax
from jax.experimental import pallas as pl
from jax.experimental.pallas import tpu as pltpu

OUTPUT_SHAPE = (4, 2)        # event shape of the flow (T, D)
HIDDEN = 64                  # flow / merger hidden size
VMEM = pltpu.MemorySpace.VMEM
_LOG_2PI = float(np.log(2.0 * np.pi))


# ----------------------------------------------------------------------------- helpers
def _sigmoid(x):
    return 1.0 / (1.0 + jnp.exp(-x))


def _softplus(x):
    # stable softplus built from ops that lower cleanly in Mosaic
    return jnp.maximum(x, 0.0) + jnp.log(1.0 + jnp.exp(-jnp.abs(x)))


# ----------------------------------------------------------------------------- fused encoder + merger kernel
def _encoder_merger_kernel(patch_ref, stem_w, stem_b, exp_w, exp_b, cls_w, cls_b,
                           other_ref, w1v, w1o, b1, w2, b2, w3, b3,
                           z_ref, pooled_scratch):
    """Grid = (Bp,). Each step: stem conv (im2col matmul) + 1x1 expand + global pool for one
    image, pooled features accumulated in VMEM scratch. Last step: classifier + 3-layer
    merger MLP -> z. No HBM round trips between stages."""
    b = pl.program_id(0)

    # stem conv (im2col matmul) + ReLU6                                     [P, 32]
    s = jnp.dot(patch_ref[0], stem_w[...], preferred_element_type=jnp.float32) + stem_b[...]
    s = jnp.clip(s, 0.0, 6.0)

    # 1x1 expansion to 1280 channels (bf16 MXU inputs, f32 accumulate)      [P, 1280]
    e = jnp.dot(s.astype(jnp.bfloat16), exp_w[...],
                preferred_element_type=jnp.float32) + exp_b[...]
    e = jnp.clip(e, 0.0, 6.0)

    # global average pool for this batch element, kept in VMEM scratch
    pooled_scratch[pl.ds(b, 1), :] = jnp.mean(e, axis=0, keepdims=True)

    @pl.when(b == pl.num_programs(0) - 1)
    def _():
        pooled = pooled_scratch[...]                                        # [Bp, 1280]
        vis = jnp.dot(pooled.astype(jnp.bfloat16), cls_w[...],
                      preferred_element_type=jnp.float32) + cls_b[...]      # [Bp, 128]
        # merger layer 1: visual block on the MXU; the 5 scalar features
        # (velocity || traffic-light state) as VPU broadcast FMAs (K=5 is MXU-hostile).
        h1 = jnp.dot(vis, w1v[...], preferred_element_type=jnp.float32) + b1[...]
        other = other_ref[...]
        w1o_v = w1o[...]
        for j in range(other_ref.shape[1]):
            h1 = h1 + other[:, j:j + 1] * w1o_v[j:j + 1, :]
        h1 = jnp.maximum(h1, 0.0)
        h2 = jnp.maximum(jnp.dot(h1, w2[...], preferred_element_type=jnp.float32) + b2[...], 0.0)
        z_ref[...] = jnp.maximum(jnp.dot(h2, w3[...],
                                         preferred_element_type=jnp.float32) + b3[...], 0.0)


def encoder_merger_pallas(patches, other, p):
    """Fused MobileNetV2 stand-in + merger MLP. patches: [Bp, P, PC]; other: [Bp, 5]."""
    Bp, P, PC = patches.shape
    H = HIDDEN
    w1v = p["mlp_w1"][:128]                    # visual block of the first merger layer
    w1o = p["mlp_w1"][128:]                    # velocity + traffic-light block [5, H]
    exp_w = p["exp_w"].astype(jnp.bfloat16)
    cls_w = p["cls_w"].astype(jnp.bfloat16)
    other_f = other.shape[1]
    return pl.pallas_call(
        _encoder_merger_kernel,
        out_shape=jax.ShapeDtypeStruct((Bp, H), jnp.float32),
        grid=(Bp,),
        in_specs=[
            pl.BlockSpec((1, P, PC), lambda b: (b, 0, 0)),       # per-image im2col patches
            pl.BlockSpec((PC, 32), lambda b: (0, 0)),            # stem_w
            pl.BlockSpec((1, 32), lambda b: (0, 0)),             # stem_b
            pl.BlockSpec((32, 1280), lambda b: (0, 0)),          # exp_w (bf16)
            pl.BlockSpec((1, 1280), lambda b: (0, 0)),           # exp_b
            pl.BlockSpec((1280, 128), lambda b: (0, 0)),         # cls_w (bf16)
            pl.BlockSpec((1, 128), lambda b: (0, 0)),            # cls_b
            pl.BlockSpec((Bp, other_f), lambda b: (0, 0)),       # velocity || traffic light
            pl.BlockSpec((128, H), lambda b: (0, 0)),            # mlp_w1 (visual rows)
            pl.BlockSpec((other_f, H), lambda b: (0, 0)),        # mlp_w1 (other rows)
            pl.BlockSpec((1, H), lambda b: (0, 0)),              # mlp_b1
            pl.BlockSpec((H, H), lambda b: (0, 0)),              # mlp_w2
            pl.BlockSpec((1, H), lambda b: (0, 0)),              # mlp_b2
            pl.BlockSpec((H, H), lambda b: (0, 0)),              # mlp_w3
            pl.BlockSpec((1, H), lambda b: (0, 0)),              # mlp_b3
        ],
        out_specs=pl.BlockSpec((Bp, H), lambda b: (0, 0)),
        scratch_shapes=[pltpu.VMEM((Bp, 1280), jnp.float32)],
        compiler_params=pltpu.CompilerParams(dimension_semantics=("arbitrary",)),
    )(patches, p["stem_w"], p["stem_b"], exp_w, p["exp_b"], cls_w, p["cls_b"],
      other, w1v, w1o, p["mlp_b1"], p["mlp_w2"], p["mlp_b2"], p["mlp_w3"], p["mlp_b3"])


# ----------------------------------------------------------------------------- fused autoregressive-flow kernel
def _flow_fused_kernel(x_ref, z_ref, wih, whh, bi, bh, hw, hb, y_ref, ll_ref):
    """Flow forward + analytic inverse statistics in one pass.

    Since inverse(forward(x)) == x, the base log-prob and log|det J| needed for the imitation
    prior are computed directly during the forward recurrence (no second GRU pass)."""
    T, D = OUTPUT_SHAPE
    H = HIDDEN
    h = z_ref[...]
    Bp = h.shape[0]
    wih_v, whh_v = wih[...], whh[...]
    bi_v, bh_v = bi[...], bh[...]
    hw_v, hb_v = hw[...], hb[...]

    y_tm1 = jnp.zeros((Bp, D), jnp.float32)
    lad = jnp.zeros((Bp, 1), jnp.float32)
    ssq = jnp.zeros((Bp, 1), jnp.float32)
    ys = []
    for t in range(T):                                   # static unroll, T = 4
        x_t = x_ref[:, t * D:(t + 1) * D]
        # fused GRU gates: K=D(=2) input projection on the VPU (broadcast FMAs),
        # hidden projection as one [H, 3H] MXU matmul.
        gi = bi_v
        for d in range(D):
            gi = gi + y_tm1[:, d:d + 1] * wih_v[d:d + 1, :]
        gh = jnp.dot(h, whh_v, preferred_element_type=jnp.float32) + bh_v
        r = _sigmoid(gi[:, :H] + gh[:, :H])
        u = _sigmoid(gi[:, H:2 * H] + gh[:, H:2 * H])
        n = jnp.tanh(gi[:, 2 * H:] + r * gh[:, 2 * H:])
        h = (1.0 - u) * n + u * h
        # loc || scale heads fused into a single [H, 2D] matmul
        head = jnp.dot(h, hw_v, preferred_element_type=jnp.float32) + hb_v
        dloc = head[:, :D]
        scale = _softplus(head[:, D:]) + 1e-3
        y_t = (y_tm1 + dloc) + scale * x_t
        ys.append(y_t)
        lad = lad + jnp.sum(jnp.log(scale), axis=-1, keepdims=True)
        ssq = ssq + jnp.sum(x_t * x_t, axis=-1, keepdims=True)
        y_tm1 = y_t
    y_ref[...] = jnp.concatenate(ys, axis=-1)            # one lane-dense [Bp, T*D] store
    ll_ref[...] = (-0.5 * ssq - 0.5 * float(T * D) * _LOG_2PI) - lad   # log_prob - logabsdet


def flow_fused_pallas(x_flat, z, wih, whh, bi, bh, hw, hb):
    Bp, TD = x_flat.shape
    return pl.pallas_call(
        _flow_fused_kernel,
        out_shape=(jax.ShapeDtypeStruct((Bp, TD), jnp.float32),
                   jax.ShapeDtypeStruct((Bp, 1), jnp.float32)),
        in_specs=[pl.BlockSpec(memory_space=VMEM)] * 8,
        out_specs=(pl.BlockSpec(memory_space=VMEM),) * 2,
    )(x_flat, z, wih, whh, bi, bh, hw, hb)


def _flow_fused_ref(x_flat, z, wih, whh, bi, bh, hw, hb):
    """Pure-JAX mirror of _flow_fused_kernel (identical math) — used only for the backward
    pass of the custom VJP and for a one-off correctness check outside the hot loop."""
    T, D = OUTPUT_SHAPE
    H = HIDDEN
    Bp = x_flat.shape[0]
    h = z
    y_tm1 = jnp.zeros((Bp, D), jnp.float32)
    lad = jnp.zeros((Bp, 1), jnp.float32)
    ssq = jnp.zeros((Bp, 1), jnp.float32)
    ys = []
    for t in range(T):
        x_t = x_flat[:, t * D:(t + 1) * D]
        gi = bi + jnp.dot(y_tm1, wih, preferred_element_type=jnp.float32)
        gh = bh + jnp.dot(h, whh, preferred_element_type=jnp.float32)
        r = _sigmoid(gi[:, :H] + gh[:, :H])
        u = _sigmoid(gi[:, H:2 * H] + gh[:, H:2 * H])
        n = jnp.tanh(gi[:, 2 * H:] + r * gh[:, 2 * H:])
        h = (1.0 - u) * n + u * h
        head = jnp.dot(h, hw, preferred_element_type=jnp.float32) + hb
        dloc = head[:, :D]
        scale = _softplus(head[:, D:]) + 1e-3
        y_t = (y_tm1 + dloc) + scale * x_t
        ys.append(y_t)
        lad = lad + jnp.sum(jnp.log(scale), axis=-1, keepdims=True)
        ssq = ssq + jnp.sum(x_t * x_t, axis=-1, keepdims=True)
        y_tm1 = y_t
    y_flat = jnp.concatenate(ys, axis=-1)
    ll = (-0.5 * ssq - 0.5 * float(T * D) * _LOG_2PI) - lad
    return y_flat, ll


# ----------------------------------------------------------------------------- objective (imitation prior + goal)
def _objective_from_parts(y_flat, ll, goal_flat, maskv, eps, goal_weight):
    """-(imitation_prior + goal_likelihood), masked means over the padded batch."""
    T, D = OUTPUT_SHAPE
    Bp = y_flat.shape[0]
    K = goal_flat.shape[1] // D
    n_valid = jnp.sum(maskv)
    imitation_prior = jnp.sum(maskv * ll[:, 0]) / n_valid
    y_last = y_flat[:, (T - 1) * D:]
    goal = goal_flat.reshape(Bp, K, D)
    diff = (y_last[:, None, :] - goal) / eps
    comp_lp = jnp.sum(-0.5 * diff * diff - jnp.log(eps) - 0.5 * _LOG_2PI, axis=-1)   # [Bp, K]
    mix_lp = jax.scipy.special.logsumexp(comp_lp, axis=-1) - jnp.log(float(K))
    goal_likelihood = jnp.sum(maskv * mix_lp) / n_valid
    return -(imitation_prior + goal_weight * goal_likelihood)


def _flow_objective_impl(x_flat, z, wih, whh, bi, bh, hw, hb, goal_flat, maskv, eps, gw):
    y_flat, ll = flow_fused_pallas(x_flat, z, wih, whh, bi, bh, hw, hb)
    return _objective_from_parts(y_flat, ll, goal_flat, maskv, eps, gw)


def _flow_objective_ref(x_flat, z, wih, whh, bi, bh, hw, hb, goal_flat, maskv, eps, gw):
    y_flat, ll = _flow_fused_ref(x_flat, z, wih, whh, bi, bh, hw, hb)
    return _objective_from_parts(y_flat, ll, goal_flat, maskv, eps, gw)


flow_objective = jax.custom_vjp(_flow_objective_impl)


def _flow_objective_fwd(*args):
    return _flow_objective_impl(*args), args


def _flow_objective_bwd(args, g):
    # TODO(synk): backward pass is the pure-JAX mirror of the same fused flow math, not a
    #             hand-written Pallas kernel; only d(loss)/dx is consumed by the optimizer.
    x_flat, rest = args[0], args[1:]
    _, vjp = jax.vjp(lambda xx: _flow_objective_ref(xx, *rest), x_flat)
    (dx,) = vjp(g)
    return (dx,) + tuple(jnp.zeros_like(a) for a in rest)


flow_objective.defvjp(_flow_objective_fwd, _flow_objective_bwd)


# ----------------------------------------------------------------------------- im2col / param fusion helpers
def _im2col(x, k, s, p):
    """x: NHWC -> [B, OH, OW, k*k*C] patches (padding p, stride s)."""
    B, H, W, C = x.shape
    xp = jnp.pad(x, ((0, 0), (p, p), (p, p), (0, 0)))
    OH = (H + 2 * p - k) // s + 1
    OW = (W + 2 * p - k) // s + 1
    cols = []
    for di in range(k):
        for dj in range(k):
            cols.append(xp[:, di:di + s * OH:s, dj:dj + s * OW:s, :])
    return jnp.concatenate(cols, axis=-1)


def _fused_flow_params(p):
    """Concatenate per-gate GRU params and the loc/scale heads for the fused kernel."""
    wih = jnp.concatenate([p["gru_wi"][g] for g in range(3)], axis=1)   # [D, 3H]
    whh = jnp.concatenate([p["gru_wh"][g] for g in range(3)], axis=1)   # [H, 3H]
    bi = jnp.concatenate([p["gru_bi"][g] for g in range(3)], axis=1)    # [1, 3H]
    bh = jnp.concatenate([p["gru_bh"][g] for g in range(3)], axis=1)    # [1, 3H]
    hw = jnp.concatenate([p["loc_w"], p["scale_w"]], axis=1)            # [H, 2D]
    hb = jnp.concatenate([p["loc_b"], p["scale_b"]], axis=1)            # [1, 2D]
    return wih, whh, bi, bh, hw, hb


# ----------------------------------------------------------------------------- device-side forward (one jit, no host syncs)
@functools.partial(jax.jit, static_argnames=("num_steps",))
def _device_forward(params, visual_pad, other_pad, base, goal_flat, maskv,
                    lr, eps, goal_weight, *, num_steps):
    T, D = OUTPUT_SHAPE
    Bp = visual_pad.shape[0]

    # encoder + merger: one fused Pallas call -> z [Bp, H]
    x_nhwc = jnp.transpose(visual_pad, (0, 2, 3, 1))               # channels onto the lane axis
    patches = _im2col(x_nhwc, k=3, s=2, p=1)                       # [Bp, 8, 8, 45]
    patches = patches.reshape(Bp, patches.shape[1] * patches.shape[2], patches.shape[3])
    z = encoder_merger_pallas(patches, other_pad, params)

    wih, whh, bi, bh, hw, hb = _fused_flow_params(params)

    x0 = jnp.tile(base[None, :], (Bp, 1))                          # shared base-dist sample

    def objective(xx):
        return flow_objective(xx, z, wih, whh, bi, bh, hw, hb,
                              goal_flat, maskv, eps, goal_weight)

    def body(step, carry):
        x, m, v, x_best, loss_best = carry
        loss, g = jax.value_and_grad(objective)(x)                 # Pallas fwd, matched JAX bwd
        # Adam step (PyTorch defaults: betas=(0.9, 0.999), eps=1e-8); 64 scalars -> plain XLA.
        t = (step + 1).astype(jnp.float32)
        m = 0.9 * m + 0.1 * g
        v = 0.999 * v + 0.001 * g * g
        bc1 = 1.0 - jnp.power(jnp.float32(0.9), t)
        bc2 = 1.0 - jnp.power(jnp.float32(0.999), t)
        x_new = x - lr * (m / bc1) / (jnp.sqrt(v) / jnp.sqrt(bc2) + 1e-8)
        # PyTorch clones x AFTER optimizer.step(), keyed on the PRE-update loss — keep that.
        better = loss < loss_best
        x_best = jnp.where(better, x_new, x_best)
        loss_best = jnp.where(better, loss, loss_best)
        return (x_new, m, v, x_best, loss_best)

    init = (x0, jnp.zeros_like(x0), jnp.zeros_like(x0), x0, jnp.float32(1000.0))
    _, _, _, x_best, _ = lax.fori_loop(0, num_steps, body, init)

    # final forward at the best iterate (Pallas)
    y_flat, _ = flow_fused_pallas(x_best, z, wih, whh, bi, bh, hw, hb)
    return y_flat


# ----------------------------------------------------------------------------- model forward (host wrapper)
def imitative_model_forward(params, num_steps, context, goal=None, lr=0.1,
                            epsilon=1.0, base_key=None):
    # host-side boolean masking (data-dependent shapes -> outside jit)
    mask = np.asarray(context["mask"]).astype(bool)
    visual_in = np.asarray(context["image_resNet+grid"], np.float32)[mask]
    traj_in = np.asarray(context["traj_in_rotated_glob"], np.float32)[mask]
    traj_out = np.asarray(context["traj_out_rotated_glob"], np.float32)[mask]
    tl_state = np.asarray(context["action_gt"], np.float32)[mask]

    full_traj = np.concatenate([traj_in, traj_out], axis=-2)
    full_traj = full_traj - traj_in[0, -1]        # NOTE: batch-0 normalization, as in the PyTorch module
    traj_in = full_traj[:, :8, :]
    traj_out = full_traj[:, 8:, :]

    B = visual_in.shape[0]
    velocity = (traj_out[:, 0, :] - traj_in[:, -1, :]) / 0.5
    velocity = np.concatenate([velocity, np.zeros((B, 1), np.float32)], axis=-1)
    other = np.concatenate([velocity, tl_state], axis=-1).astype(np.float32)   # [B, 5]

    # pad the masked batch once to a sublane multiple (8); carry a validity mask
    T, D = OUTPUT_SHAPE
    Bp = max(8, int(-(-B // 8) * 8))
    pad = Bp - B
    visual_pad = np.concatenate([visual_in, np.zeros((pad,) + visual_in.shape[1:], np.float32)], 0)
    other_pad = np.concatenate([other, np.zeros((pad, other.shape[1]), np.float32)], 0)
    maskv = np.concatenate([np.ones((B,), np.float32), np.zeros((pad,), np.float32)], 0)

    if goal is not None:
        goal_np = np.asarray(goal, np.float32)
        K = goal_np.shape[1]
        goal_pad = np.concatenate([goal_np, np.zeros((pad, K, D), np.float32)], 0).reshape(Bp, K * D)
        goal_weight = 1.0
    else:
        goal_pad = np.zeros((Bp, D), np.float32)   # dummy single component, weighted out
        goal_weight = 0.0

    # base-distribution sample, shared across the batch (matches .repeat(B,1).view(B,T,D))
    base = jax.random.normal(base_key, (T * D,), jnp.float32)

    y_flat = _device_forward(params, jnp.asarray(visual_pad), jnp.asarray(other_pad),
                             base, jnp.asarray(goal_pad), jnp.asarray(maskv),
                             jnp.float32(lr), jnp.float32(epsilon), jnp.float32(goal_weight),
                             num_steps=int(num_steps))
    return y_flat[:B].reshape(B, T, D)


# ----------------------------------------------------------------------------- params
def init_params(key):
    ks = jax.random.split(key, 12)

    def w(k, shape, scale=0.05):
        return scale * jax.random.normal(k, shape, jnp.float32)

    p = {
        # encoder (MobileNetV2 stand-in)
        "stem_w": w(ks[0], (45, 32)),      "stem_b": jnp.zeros((1, 32), jnp.float32),
        "exp_w": w(ks[1], (32, 1280)),     "exp_b": jnp.zeros((1, 1280), jnp.float32),
        "cls_w": w(ks[2], (1280, 128)),    "cls_b": jnp.zeros((1, 128), jnp.float32),
        # merger MLP: 133 -> 64 -> 64 -> 64 (ReLU, activate_final)
        "mlp_w1": w(ks[3], (133, HIDDEN)), "mlp_b1": jnp.zeros((1, HIDDEN), jnp.float32),
        "mlp_w2": w(ks[4], (HIDDEN, HIDDEN)), "mlp_b2": jnp.zeros((1, HIDDEN), jnp.float32),
        "mlp_w3": w(ks[5], (HIDDEN, HIDDEN)), "mlp_b3": jnp.zeros((1, HIDDEN), jnp.float32),
        # AutoregressiveFlow: GRUCell(2, 64) + loc/scale Linear(64, 2)
        "gru_wi": w(ks[6], (3, OUTPUT_SHAPE[1], HIDDEN)),
        "gru_wh": w(ks[7], (3, HIDDEN, HIDDEN)),
        "gru_bi": 0.01 * jax.random.normal(ks[8], (3, 1, HIDDEN), jnp.float32),
        "gru_bh": 0.01 * jax.random.normal(ks[9], (3, 1, HIDDEN), jnp.float32),
        "loc_w": w(ks[10], (HIDDEN, OUTPUT_SHAPE[1])),
        "loc_b": jnp.zeros((1, OUTPUT_SHAPE[1]), jnp.float32),
        "scale_w": w(ks[11], (HIDDEN, OUTPUT_SHAPE[1])),
        "scale_b": jnp.zeros((1, OUTPUT_SHAPE[1]), jnp.float32),
    }
    return p


# ----------------------------------------------------------------------------- main
if __name__ == "__main__":
    key = jax.random.PRNGKey(0)
    kp, kc, ks, kchk = jax.random.split(key, 4)
    params = init_params(kp)

    # one-off correctness check of the fused flow kernel vs its pure-JAX mirror
    # (runs once here, NOT inside the optimizer loop).
    wih, whh, bi, bh, hw, hb = _fused_flow_params(params)
    kx, kz = jax.random.split(kchk)
    x_chk = jax.random.normal(kx, (8, OUTPUT_SHAPE[0] * OUTPUT_SHAPE[1]), jnp.float32)
    z_chk = jax.random.normal(kz, (8, HIDDEN), jnp.float32)
    y_k, ll_k = flow_fused_pallas(x_chk, z_chk, wih, whh, bi, bh, hw, hb)
    y_r, ll_r = _flow_fused_ref(x_chk, z_chk, wih, whh, bi, bh, hw, hb)
    np.testing.assert_allclose(np.asarray(y_k), np.asarray(y_r), rtol=1e-2, atol=1e-2)
    np.testing.assert_allclose(np.asarray(ll_k), np.asarray(ll_r), rtol=1e-2, atol=1e-2)

    N = 4  # raw batch before masking
    kk = jax.random.split(kc, 6)
    context = {
        "image_resNet+grid": jax.random.normal(kk[0], (N, 5, 16, 16), jnp.float32),  # NCHW
        "traj_in_rotated_glob": jax.random.normal(kk[1], (N, 8, 2), jnp.float32),
        "traj_out_rotated_glob": jax.random.normal(kk[2], (N, 4, 2), jnp.float32),
        "action_gt": jax.random.normal(kk[3], (N, 2), jnp.float32),
        "mask": np.array([True, False, True, True]),
    }
    B = int(np.sum(context["mask"]))
    goal = jax.random.normal(kk[4], (B, 2, 2), jnp.float32)

    y = imitative_model_forward(params, num_steps=3, context=context, goal=goal,
                                lr=0.1, epsilon=1.0, base_key=ks)
    y = jax.block_until_ready(y)
    assert y.shape == (B, OUTPUT_SHAPE[0], OUTPUT_SHAPE[1])
    assert bool(jnp.all(jnp.isfinite(y)))
    print("KERNEL_OK")
</pallas_src>

<mosaic_0001>
module attributes {stable_mosaic.version = 11 : i64} {
  func.func @_flow_fused_kernel(%arg0: memref<8x8xf32, #tpu.memory_space<vmem>>, %arg1: memref<8x64xf32, #tpu.memory_space<vmem>>, %arg2: memref<2x192xf32, #tpu.memory_space<vmem>>, %arg3: memref<64x192xf32, #tpu.memory_space<vmem>>, %arg4: memref<1x192xf32, #tpu.memory_space<vmem>>, %arg5: memref<1x192xf32, #tpu.memory_space<vmem>>, %arg6: memref<64x4xf32, #tpu.memory_space<vmem>>, %arg7: memref<1x4xf32, #tpu.memory_space<vmem>>, %arg8: memref<8x8xf32, #tpu.memory_space<vmem>>, %arg9: memref<8x1xf32, #tpu.memory_space<vmem>>) attributes {dimension_semantics = [], scalar_prefetch = 0 : i64, scratch_operands = 0 : i64, tpu.core_type = #tpu.core_type<tc>} {
    %c0 = arith.constant 0 : index
    %c0_0 = arith.constant 0 : index
    %0 = vector.load %arg1[%c0, %c0_0] : memref<8x64xf32, #tpu.memory_space<vmem>>, vector<8x64xf32>
    %c0_1 = arith.constant 0 : index
    %c0_2 = arith.constant 0 : index
    %1 = vector.load %arg2[%c0_1, %c0_2] : memref<2x192xf32, #tpu.memory_space<vmem>>, vector<2x192xf32>
    %c0_3 = arith.constant 0 : index
    %c0_4 = arith.constant 0 : index
    %2 = vector.load %arg3[%c0_3, %c0_4] : memref<64x192xf32, #tpu.memory_space<vmem>>, vector<64x192xf32>
    %c0_5 = arith.constant 0 : index
    %c0_6 = arith.constant 0 : index
    %3 = vector.load %arg4[%c0_5, %c0_6] : memref<1x192xf32, #tpu.memory_space<vmem>>, vector<1x192xf32>
    %c0_7 = arith.constant 0 : index
    %c0_8 = arith.constant 0 : index
    %4 = vector.load %arg5[%c0_7, %c0_8] : memref<1x192xf32, #tpu.memory_space<vmem>>, vector<1x192xf32>
    %c0_9 = arith.constant 0 : index
    %c0_10 = arith.constant 0 : index
    %5 = vector.load %arg6[%c0_9, %c0_10] : memref<64x4xf32, #tpu.memory_space<vmem>>, vector<64x4xf32>
    %c0_11 = arith.constant 0 : index
    %c0_12 = arith.constant 0 : index
    %6 = vector.load %arg7[%c0_11, %c0_12] : memref<1x4xf32, #tpu.memory_space<vmem>>, vector<1x4xf32>
    %cst = arith.constant 0.000000e+00 : f32
    %7 = vector.broadcast %cst : f32 to vector<8x2xf32>
    %cst_13 = arith.constant 0.000000e+00 : f32
    %8 = vector.broadcast %cst_13 : f32 to vector<8x1xf32>
    %cst_14 = arith.constant 0.000000e+00 : f32
    %9 = vector.broadcast %cst_14 : f32 to vector<8x1xf32>
    %c0_15 = arith.constant 0 : index
    %c0_16 = arith.constant 0 : index
    %10 = vector.load %arg0[%c0_15, %c0_16] : memref<8x8xf32, #tpu.memory_space<vmem>>, vector<8x2xf32>
    %11 = vector.extract_strided_slice %7 {offsets = [0, 0], sizes = [8, 1], strides = [1, 1]} : vector<8x2xf32> to vector<8x1xf32>
    %12 = vector.extract_strided_slice %1 {offsets = [0, 0], sizes = [1, 192], strides = [1, 1]} : vector<2x192xf32> to vector<1x192xf32>
    %13 = vector.broadcast %11 : vector<8x1xf32> to vector<8x192xf32>
    %14 = vector.broadcast %12 : vector<1x192xf32> to vector<8x192xf32>
    %15 = arith.mulf %13, %14 : vector<8x192xf32>
    %16 = vector.broadcast %3 : vector<1x192xf32> to vector<8x192xf32>
    %17 = arith.addf %16, %15 : vector<8x192xf32>
    %18 = vector.extract_strided_slice %7 {offsets = [0, 1], sizes = [8, 1], strides = [1, 1]} : vector<8x2xf32> to vector<8x1xf32>
    %19 = vector.extract_strided_slice %1 {offsets = [1, 0], sizes = [1, 192], strides = [1, 1]} : vector<2x192xf32> to vector<1x192xf32>
    %20 = vector.broadcast %18 : vector<8x1xf32> to vector<8x192xf32>
    %21 = vector.broadcast %19 : vector<1x192xf32> to vector<8x192xf32>
    %22 = arith.mulf %20, %21 : vector<8x192xf32>
    %23 = arith.addf %17, %22 : vector<8x192xf32>
    %cst_17 = arith.constant dense<0.000000e+00> : vector<8x192xf32>
    %24 = tpu.matmul %0, %2, %cst_17 {dimension_numbers = #tpu.dot_dimension_numbers<[1], [0], [0], [1], [0, 0, 1, 1], [], []>} : vector<8x64xf32>, vector<64x192xf32>, vector<8x192xf32> -> vector<8x192xf32>
    %25 = vector.broadcast %4 : vector<1x192xf32> to vector<8x192xf32>
    %26 = arith.addf %24, %25 : vector<8x192xf32>
    %27 = vector.extract_strided_slice %23 {offsets = [0, 0], sizes = [8, 64], strides = [1, 1]} : vector<8x192xf32> to vector<8x64xf32>
    %28 = vector.extract_strided_slice %26 {offsets = [0, 0], sizes = [8, 64], strides = [1, 1]} : vector<8x192xf32> to vector<8x64xf32>
    %29 = arith.addf %27, %28 : vector<8x64xf32>
    %cst_18 = arith.constant 0.000000e+00 : f32
    %30 = vector.broadcast %cst_18 : f32 to vector<8x64xf32>
    %31 = arith.subf %30, %29 : vector<8x64xf32>
    %32 = math.exp %31 : vector<8x64xf32>
    %cst_19 = arith.constant 1.000000e+00 : f32
    %33 = vector.broadcast %cst_19 : f32 to vector<8x64xf32>
    %34 = arith.addf %33, %32 : vector<8x64xf32>
    %cst_20 = arith.constant 1.000000e+00 : f32
    %35 = vector.broadcast %cst_20 : f32 to vector<8x64xf32>
    %36 = arith.divf %35, %34 : vector<8x64xf32>
    %37 = vector.extract_strided_slice %23 {offsets = [0, 64], sizes = [8, 64], strides = [1, 1]} : vector<8x192xf32> to vector<8x64xf32>
    %38 = vector.extract_strided_slice %26 {offsets = [0, 64], sizes = [8, 64], strides = [1, 1]} : vector<8x192xf32> to vector<8x64xf32>
    %39 = arith.addf %37, %38 : vector<8x64xf32>
    %cst_21 = arith.constant 0.000000e+00 : f32
    %40 = vector.broadcast %cst_21 : f32 to vector<8x64xf32>
    %41 = arith.subf %40, %39 : vector<8x64xf32>
    %42 = math.exp %41 : vector<8x64xf32>
    %cst_22 = arith.constant 1.000000e+00 : f32
    %43 = vector.broadcast %cst_22 : f32 to vector<8x64xf32>
    %44 = arith.addf %43, %42 : vector<8x64xf32>
    %cst_23 = arith.constant 1.000000e+00 : f32
    %45 = vector.broadcast %cst_23 : f32 to vector<8x64xf32>
    %46 = arith.divf %45, %44 : vector<8x64xf32>
    %47 = vector.extract_strided_slice %23 {offsets = [0, 128], sizes = [8, 64], strides = [1, 1]} : vector<8x192xf32> to vector<8x64xf32>
    %48 = vector.extract_strided_slice %26 {offsets = [0, 128], sizes = [8, 64], strides = [1, 1]} : vector<8x192xf32> to vector<8x64xf32>
    %49 = arith.mulf %36, %48 : vector<8x64xf32>
    %50 = arith.addf %47, %49 : vector<8x64xf32>
    %51 = math.tanh %50 : vector<8x64xf32>
    %cst_24 = arith.constant 1.000000e+00 : f32
    %52 = vector.broadcast %cst_24 : f32 to vector<8x64xf32>
    %53 = arith.subf %52, %46 : vector<8x64xf32>
    %54 = arith.mulf %53, %51 : vector<8x64xf32>
    %55 = arith.mulf %46, %0 : vector<8x64xf32>
    %56 = arith.addf %54, %55 : vector<8x64xf32>
    %cst_25 = arith.constant dense<0.000000e+00> : vector<8x4xf32>
    %57 = tpu.matmul %56, %5, %cst_25 {dimension_numbers = #tpu.dot_dimension_numbers<[1], [0], [0], [1], [0, 0, 1, 1], [], []>} : vector<8x64xf32>, vector<64x4xf32>, vector<8x4xf32> -> vector<8x4xf32>
    %58 = vector.broadcast %6 : vector<1x4xf32> to vector<8x4xf32>
    %59 = arith.addf %57, %58 : vector<8x4xf32>
    %60 = vector.extract_strided_slice %59 {offsets = [0, 0], sizes = [8, 2], strides = [1, 1]} : vector<8x4xf32> to vector<8x2xf32>
    %61 = vector.extract_strided_slice %59 {offsets = [0, 2], sizes = [8, 2], strides = [1, 1]} : vector<8x4xf32> to vector<8x2xf32>
    %cst_26 = arith.constant 0.000000e+00 : f32
    %62 = vector.broadcast %cst_26 : f32 to vector<8x2xf32>
    %63 = arith.maximumf %61, %62 : vector<8x2xf32>
    %64 = math.absf %61 : vector<8x2xf32>
    %cst_27 = arith.constant 0.000000e+00 : f32
    %65 = vector.broadcast %cst_27 : f32 to vector<8x2xf32>
    %66 = arith.subf %65, %64 : vector<8x2xf32>
    %67 = math.exp %66 : vector<8x2xf32>
    %cst_28 = arith.constant 1.000000e+00 : f32
    %68 = vector.broadcast %cst_28 : f32 to vector<8x2xf32>
    %69 = arith.addf %68, %67 : vector<8x2xf32>
    %70 = math.log %69 : vector<8x2xf32>
    %71 = arith.addf %63, %70 : vector<8x2xf32>
    %cst_29 = arith.constant 1.000000e-03 : f32
    %72 = vector.broadcast %cst_29 : f32 to vector<8x2xf32>
    %73 = arith.addf %71, %72 : vector<8x2xf32>
    %74 = arith.addf %7, %60 : vector<8x2xf32>
    %75 = arith.mulf %73, %10 : vector<8x2xf32>
    %76 = arith.addf %74, %75 : vector<8x2xf32>
    %77 = math.log %73 : vector<8x2xf32>
    %cst_30 = arith.constant dense<0.000000e+00> : vector<8xf32>
    %78 = vector.multi_reduction <add>, %77, %cst_30 [1] : vector<8x2xf32> to vector<8xf32>
    %79 = vector.shape_cast %78 : vector<8xf32> to vector<8x1xf32>
    %80 = arith.addf %8, %79 : vector<8x1xf32>
    %81 = arith.mulf %10, %10 : vector<8x2xf32>
    %cst_31 = arith.constant dense<0.000000e+00> : vector<8xf32>
    %82 = vector.multi_reduction <add>, %81, %cst_31 [1] : vector<8x2xf32> to vector<8xf32>
    %83 = vector.shape_cast %82 : vector<8xf32> to vector<8x1xf32>
    %84 = arith.addf %9, %83 : vector<8x1xf32>
    %c0_32 = arith.constant 0 : index
    %c2 = arith.constant 2 : index
    %85 = vector.load %arg0[%c0_32, %c2] : memref<8x8xf32, #tpu.memory_space<vmem>>, vector<8x2xf32>
    %86 = vector.extract_strided_slice %76 {offsets = [0, 0], sizes = [8, 1], strides = [1, 1]} : vector<8x2xf32> to vector<8x1xf32>
    %87 = vector.extract_strided_slice %1 {offsets = [0, 0], sizes = [1, 192], strides = [1, 1]} : vector<2x192xf32> to vector<1x192xf32>
    %88 = vector.broadcast %86 : vector<8x1xf32> to vector<8x192xf32>
    %89 = vector.broadcast %87 : vector<1x192xf32> to vector<8x192xf32>
    %90 = arith.mulf %88, %89 : vector<8x192xf32>
    %91 = vector.broadcast %3 : vector<1x192xf32> to vector<8x192xf32>
    %92 = arith.addf %91, %90 : vector<8x192xf32>
    %93 = vector.extract_strided_slice %76 {offsets = [0, 1], sizes = [8, 1], strides = [1, 1]} : vector<8x2xf32> to vector<8x1xf32>
    %94 = vector.extract_strided_slice %1 {offsets = [1, 0], sizes = [1, 192], strides = [1, 1]} : vector<2x192xf32> to vector<1x192xf32>
    %95 = vector.broadcast %93 : vector<8x1xf32> to vector<8x192xf32>
    %96 = vector.broadcast %94 : vector<1x192xf32> to vector<8x192xf32>
    %97 = arith.mulf %95, %96 : vector<8x192xf32>
    %98 = arith.addf %92, %97 : vector<8x192xf32>
    %cst_33 = arith.constant dense<0.000000e+00> : vector<8x192xf32>
    %99 = tpu.matmul %56, %2, %cst_33 {dimension_numbers = #tpu.dot_dimension_numbers<[1], [0], [0], [1], [0, 0, 1, 1], [], []>} : vector<8x64xf32>, vector<64x192xf32>, vector<8x192xf32> -> vector<8x192xf32>
    %100 = vector.broadcast %4 : vector<1x192xf32> to vector<8x192xf32>
    %101 = arith.addf %99, %100 : vector<8x192xf32>
    %102 = vector.extract_strided_slice %98 {offsets = [0, 0], sizes = [8, 64], strides = [1, 1]} : vector<8x192xf32> to vector<8x64xf32>
    %103 = vector.extract_strided_slice %101 {offsets = [0, 0], sizes = [8, 64], strides = [1, 1]} : vector<8x192xf32> to vector<8x64xf32>
    %104 = arith.addf %102, %103 : vector<8x64xf32>
    %cst_34 = arith.constant 0.000000e+00 : f32
    %105 = vector.broadcast %cst_34 : f32 to vector<8x64xf32>
    %106 = arith.subf %105, %104 : vector<8x64xf32>
    %107 = math.exp %106 : vector<8x64xf32>
    %cst_35 = arith.constant 1.000000e+00 : f32
    %108 = vector.broadcast %cst_35 : f32 to vector<8x64xf32>
    %109 = arith.addf %108, %107 : vector<8x64xf32>
    %cst_36 = arith.constant 1.000000e+00 : f32
    %110 = vector.broadcast %cst_36 : f32 to vector<8x64xf32>
    %111 = arith.divf %110, %109 : vector<8x64xf32>
    %112 = vector.extract_strided_slice %98 {offsets = [0, 64], sizes = [8, 64], strides = [1, 1]} : vector<8x192xf32> to vector<8x64xf32>
    %113 = vector.extract_strided_slice %101 {offsets = [0, 64], sizes = [8, 64], strides = [1, 1]} : vector<8x192xf32> to vector<8x64xf32>
    %114 = arith.addf %112, %113 : vector<8x64xf32>
    %cst_37 = arith.constant 0.000000e+00 : f32
    %115 = vector.broadcast %cst_37 : f32 to vector<8x64xf32>
    %116 = arith.subf %115, %114 : vector<8x64xf32>
    %117 = math.exp %116 : vector<8x64xf32>
    %cst_38 = arith.constant 1.000000e+00 : f32
    %118 = vector.broadcast %cst_38 : f32 to vector<8x64xf32>
    %119 = arith.addf %118, %117 : vector<8x64xf32>
    %cst_39 = arith.constant 1.000000e+00 : f32
    %120 = vector.broadcast %cst_39 : f32 to vector<8x64xf32>
    %121 = arith.divf %120, %119 : vector<8x64xf32>
    %122 = vector.extract_strided_slice %98 {offsets = [0, 128], sizes = [8, 64], strides = [1, 1]} : vector<8x192xf32> to vector<8x64xf32>
    %123 = vector.extract_strided_slice %101 {offsets = [0, 128], sizes = [8, 64], strides = [1, 1]} : vector<8x192xf32> to vector<8x64xf32>
    %124 = arith.mulf %111, %123 : vector<8x64xf32>
    %125 = arith.addf %122, %124 : vector<8x64xf32>
    %126 = math.tanh %125 : vector<8x64xf32>
    %cst_40 = arith.constant 1.000000e+00 : f32
    %127 = vector.broadcast %cst_40 : f32 to vector<8x64xf32>
    %128 = arith.subf %127, %121 : vector<8x64xf32>
    %129 = arith.mulf %128, %126 : vector<8x64xf32>
    %130 = arith.mulf %121, %56 : vector<8x64xf32>
    %131 = arith.addf %129, %130 : vector<8x64xf32>
    %cst_41 = arith.constant dense<0.000000e+00> : vector<8x4xf32>
    %132 = tpu.matmul %131, %5, %cst_41 {dimension_numbers = #tpu.dot_dimension_numbers<[1], [0], [0], [1], [0, 0, 1, 1], [], []>} : vector<8x64xf32>, vector<64x4xf32>, vector<8x4xf32> -> vector<8x4xf32>
    %133 = vector.broadcast %6 : vector<1x4xf32> to vector<8x4xf32>
    %134 = arith.addf %132, %133 : vector<8x4xf32>
    %135 = vector.extract_strided_slice %134 {offsets = [0, 0], sizes = [8, 2], strides = [1, 1]} : vector<8x4xf32> to vector<8x2xf32>
    %136 = vector.extract_strided_slice %134 {offsets = [0, 2], sizes = [8, 2], strides = [1, 1]} : vector<8x4xf32> to vector<8x2xf32>
    %cst_42 = arith.constant 0.000000e+00 : f32
    %137 = vector.broadcast %cst_42 : f32 to vector<8x2xf32>
    %138 = arith.maximumf %136, %137 : vector<8x2xf32>
    %139 = math.absf %136 : vector<8x2xf32>
    %cst_43 = arith.constant 0.000000e+00 : f32
    %140 = vector.broadcast %cst_43 : f32 to vector<8x2xf32>
    %141 = arith.subf %140, %139 : vector<8x2xf32>
    %142 = math.exp %141 : vector<8x2xf32>
    %cst_44 = arith.constant 1.000000e+00 : f32
    %143 = vector.broadcast %cst_44 : f32 to vector<8x2xf32>
    %144 = arith.addf %143, %142 : vector<8x2xf32>
    %145 = math.log %144 : vector<8x2xf32>
    %146 = arith.addf %138, %145 : vector<8x2xf32>
    %cst_45 = arith.constant 1.000000e-03 : f32
    %147 = vector.broadcast %cst_45 : f32 to vector<8x2xf32>
    %148 = arith.addf %146, %147 : vector<8x2xf32>
    %149 = arith.addf %76, %135 : vector<8x2xf32>
    %150 = arith.mulf %148, %85 : vector<8x2xf32>
    %151 = arith.addf %149, %150 : vector<8x2xf32>
    %152 = math.log %148 : vector<8x2xf32>
    %cst_46 = arith.constant dense<0.000000e+00> : vector<8xf32>
    %153 = vector.multi_reduction <add>, %152, %cst_46 [1] : vector<8x2xf32> to vector<8xf32>
    %154 = vector.shape_cast %153 : vector<8xf32> to vector<8x1xf32>
    %155 = arith.addf %80, %154 : vector<8x1xf32>
    %156 = arith.mulf %85, %85 : vector<8x2xf32>
    %cst_47 = arith.constant dense<0.000000e+00> : vector<8xf32>
    %157 = vector.multi_reduction <add>, %156, %cst_47 [1] : vector<8x2xf32> to vector<8xf32>
    %158 = vector.shape_cast %157 : vector<8xf32> to vector<8x1xf32>
    %159 = arith.addf %84, %158 : vector<8x1xf32>
    %c0_48 = arith.constant 0 : index
    %c4 = arith.constant 4 : index
    %160 = vector.load %arg0[%c0_48, %c4] : memref<8x8xf32, #tpu.memory_space<vmem>>, vector<8x2xf32>
    %161 = vector.extract_strided_slice %151 {offsets = [0, 0], sizes = [8, 1], strides = [1, 1]} : vector<8x2xf32> to vector<8x1xf32>
    %162 = vector.extract_strided_slice %1 {offsets = [0, 0], sizes = [1, 192], strides = [1, 1]} : vector<2x192xf32> to vector<1x192xf32>
    %163 = vector.broadcast %161 : vector<8x1xf32> to vector<8x192xf32>
    %164 = vector.broadcast %162 : vector<1x192xf32> to vector<8x192xf32>
    %165 = arith.mulf %163, %164 : vector<8x192xf32>
    %166 = vector.broadcast %3 : vector<1x192xf32> to vector<8x192xf32>
    %167 = arith.addf %166, %165 : vector<8x192xf32>
    %168 = vector.extract_strided_slice %151 {offsets = [0, 1], sizes = [8, 1], strides = [1, 1]} : vector<8x2xf32> to vector<8x1xf32>
    %169 = vector.extract_strided_slice %1 {offsets = [1, 0], sizes = [1, 192], strides = [1, 1]} : vector<2x192xf32> to vector<1x192xf32>
    %170 = vector.broadcast %168 : vector<8x1xf32> to vector<8x192xf32>
    %171 = vector.broadcast %169 : vector<1x192xf32> to vector<8x192xf32>
    %172 = arith.mulf %170, %171 : vector<8x192xf32>
    %173 = arith.addf %167, %172 : vector<8x192xf32>
    %cst_49 = arith.constant dense<0.000000e+00> : vector<8x192xf32>
    %174 = tpu.matmul %131, %2, %cst_49 {dimension_numbers = #tpu.dot_dimension_numbers<[1], [0], [0], [1], [0, 0, 1, 1], [], []>} : vector<8x64xf32>, vector<64x192xf32>, vector<8x192xf32> -> vector<8x192xf32>
    %175 = vector.broadcast %4 : vector<1x192xf32> to vector<8x192xf32>
    %176 = arith.addf %174, %175 : vector<8x192xf32>
    %177 = vector.extract_strided_slice %173 {offsets = [0, 0], sizes = [8, 64], strides = [1, 1]} : vector<8x192xf32> to vector<8x64xf32>
    %178 = vector.extract_strided_slice %176 {offsets = [0, 0], sizes = [8, 64], strides = [1, 1]} : vector<8x192xf32> to vector<8x64xf32>
    %179 = arith.addf %177, %178 : vector<8x64xf32>
    %cst_50 = arith.constant 0.000000e+00 : f32
    %180 = vector.broadcast %cst_50 : f32 to vector<8x64xf32>
    %181 = arith.subf %180, %179 : vector<8x64xf32>
    %182 = math.exp %181 : vector<8x64xf32>
    %cst_51 = arith.constant 1.000000e+00 : f32
    %183 = vector.broadcast %cst_51 : f32 to vector<8x64xf32>
    %184 = arith.addf %183, %182 : vector<8x64xf32>
    %cst_52 = arith.constant 1.000000e+00 : f32
    %185 = vector.broadcast %cst_52 : f32 to vector<8x64xf32>
    %186 = arith.divf %185, %184 : vector<8x64xf32>
    %187 = vector.extract_strided_slice %173 {offsets = [0, 64], sizes = [8, 64], strides = [1, 1]} : vector<8x192xf32> to vector<8x64xf32>
    %188 = vector.extract_strided_slice %176 {offsets = [0, 64], sizes = [8, 64], strides = [1, 1]} : vector<8x192xf32> to vector<8x64xf32>
    %189 = arith.addf %187, %188 : vector<8x64xf32>
    %cst_53 = arith.constant 0.000000e+00 : f32
    %190 = vector.broadcast %cst_53 : f32 to vector<8x64xf32>
    %191 = arith.subf %190, %189 : vector<8x64xf32>
    %192 = math.exp %191 : vector<8x64xf32>
    %cst_54 = arith.constant 1.000000e+00 : f32
    %193 = vector.broadcast %cst_54 : f32 to vector<8x64xf32>
    %194 = arith.addf %193, %192 : vector<8x64xf32>
    %cst_55 = arith.constant 1.000000e+00 : f32
    %195 = vector.broadcast %cst_55 : f32 to vector<8x64xf32>
    %196 = arith.divf %195, %194 : vector<8x64xf32>
    %197 = vector.extract_strided_slice %173 {offsets = [0, 128], sizes = [8, 64], strides = [1, 1]} : vector<8x192xf32> to vector<8x64xf32>
    %198 = vector.extract_strided_slice %176 {offsets = [0, 128], sizes = [8, 64], strides = [1, 1]} : vector<8x192xf32> to vector<8x64xf32>
    %199 = arith.mulf %186, %198 : vector<8x64xf32>
    %200 = arith.addf %197, %199 : vector<8x64xf32>
    %201 = math.tanh %200 : vector<8x64xf32>
    %cst_56 = arith.constant 1.000000e+00 : f32
    %202 = vector.broadcast %cst_56 : f32 to vector<8x64xf32>
    %203 = arith.subf %202, %196 : vector<8x64xf32>
    %204 = arith.mulf %203, %201 : vector<8x64xf32>
    %205 = arith.mulf %196, %131 : vector<8x64xf32>
    %206 = arith.addf %204, %205 : vector<8x64xf32>
    %cst_57 = arith.constant dense<0.000000e+00> : vector<8x4xf32>
    %207 = tpu.matmul %206, %5, %cst_57 {dimension_numbers = #tpu.dot_dimension_numbers<[1], [0], [0], [1], [0, 0, 1, 1], [], []>} : vector<8x64xf32>, vector<64x4xf32>, vector<8x4xf32> -> vector<8x4xf32>
    %208 = vector.broadcast %6 : vector<1x4xf32> to vector<8x4xf32>
    %209 = arith.addf %207, %208 : vector<8x4xf32>
    %210 = vector.extract_strided_slice %209 {offsets = [0, 0], sizes = [8, 2], strides = [1, 1]} : vector<8x4xf32> to vector<8x2xf32>
    %211 = vector.extract_strided_slice %209 {offsets = [0, 2], sizes = [8, 2], strides = [1, 1]} : vector<8x4xf32> to vector<8x2xf32>
    %cst_58 = arith.constant 0.000000e+00 : f32
    %212 = vector.broadcast %cst_58 : f32 to vector<8x2xf32>
    %213 = arith.maximumf %211, %212 : vector<8x2xf32>
    %214 = math.absf %211 : vector<8x2xf32>
    %cst_59 = arith.constant 0.000000e+00 : f32
    %215 = vector.broadcast %cst_59 : f32 to vector<8x2xf32>
    %216 = arith.subf %215, %214 : vector<8x2xf32>
    %217 = math.exp %216 : vector<8x2xf32>
    %cst_60 = arith.constant 1.000000e+00 : f32
    %218 = vector.broadcast %cst_60 : f32 to vector<8x2xf32>
    %219 = arith.addf %218, %217 : vector<8x2xf32>
    %220 = math.log %219 : vector<8x2xf32>
    %221 = arith.addf %213, %220 : vector<8x2xf32>
    %cst_61 = arith.constant 1.000000e-03 : f32
    %222 = vector.broadcast %cst_61 : f32 to vector<8x2xf32>
    %223 = arith.addf %221, %222 : vector<8x2xf32>
    %224 = arith.addf %151, %210 : vector<8x2xf32>
    %225 = arith.mulf %223, %160 : vector<8x2xf32>
    %226 = arith.addf %224, %225 : vector<8x2xf32>
    %227 = math.log %223 : vector<8x2xf32>
    %cst_62 = arith.constant dense<0.000000e+00> : vector<8xf32>
    %228 = vector.multi_reduction <add>, %227, %cst_62 [1] : vector<8x2xf32> to vector<8xf32>
    %229 = vector.shape_cast %228 : vector<8xf32> to vector<8x1xf32>
    %230 = arith.addf %155, %229 : vector<8x1xf32>
    %231 = arith.mulf %160, %160 : vector<8x2xf32>
    %cst_63 = arith.constant dense<0.000000e+00> : vector<8xf32>
    %232 = vector.multi_reduction <add>, %231, %cst_63 [1] : vector<8x2xf32> to vector<8xf32>
    %233 = vector.shape_cast %232 : vector<8xf32> to vector<8x1xf32>
    %234 = arith.addf %159, %233 : vector<8x1xf32>
    %c0_64 = arith.constant 0 : index
    %c6 = arith.constant 6 : index
    %235 = vector.load %arg0[%c0_64, %c6] : memref<8x8xf32, #tpu.memory_space<vmem>>, vector<8x2xf32>
    %236 = vector.extract_strided_slice %226 {offsets = [0, 0], sizes = [8, 1], strides = [1, 1]} : vector<8x2xf32> to vector<8x1xf32>
    %237 = vector.extract_strided_slice %1 {offsets = [0, 0], sizes = [1, 192], strides = [1, 1]} : vector<2x192xf32> to vector<1x192xf32>
    %238 = vector.broadcast %236 : vector<8x1xf32> to vector<8x192xf32>
    %239 = vector.broadcast %237 : vector<1x192xf32> to vector<8x192xf32>
    %240 = arith.mulf %238, %239 : vector<8x192xf32>
    %241 = vector.broadcast %3 : vector<1x192xf32> to vector<8x192xf32>
    %242 = arith.addf %241, %240 : vector<8x192xf32>
    %243 = vector.extract_strided_slice %226 {offsets = [0, 1], sizes = [8, 1], strides = [1, 1]} : vector<8x2xf32> to vector<8x1xf32>
    %244 = vector.extract_strided_slice %1 {offsets = [1, 0], sizes = [1, 192], strides = [1, 1]} : vector<2x192xf32> to vector<1x192xf32>
    %245 = vector.broadcast %243 : vector<8x1xf32> to vector<8x192xf32>
    %246 = vector.broadcast %244 : vector<1x192xf32> to vector<8x192xf32>
    %247 = arith.mulf %245, %246 : vector<8x192xf32>
    %248 = arith.addf %242, %247 : vector<8x192xf32>
    %cst_65 = arith.constant dense<0.000000e+00> : vector<8x192xf32>
    %249 = tpu.matmul %206, %2, %cst_65 {dimension_numbers = #tpu.dot_dimension_numbers<[1], [0], [0], [1], [0, 0, 1, 1], [], []>} : vector<8x64xf32>, vector<64x192xf32>, vector<8x192xf32> -> vector<8x192xf32>
    %250 = vector.broadcast %4 : vector<1x192xf32> to vector<8x192xf32>
    %251 = arith.addf %249, %250 : vector<8x192xf32>
    %252 = vector.extract_strided_slice %248 {offsets = [0, 0], sizes = [8, 64], strides = [1, 1]} : vector<8x192xf32> to vector<8x64xf32>
    %253 = vector.extract_strided_slice %251 {offsets = [0, 0], sizes = [8, 64], strides = [1, 1]} : vector<8x192xf32> to vector<8x64xf32>
    %254 = arith.addf %252, %253 : vector<8x64xf32>
    %cst_66 = arith.constant 0.000000e+00 : f32
    %255 = vector.broadcast %cst_66 : f32 to vector<8x64xf32>
    %256 = arith.subf %255, %254 : vector<8x64xf32>
    %257 = math.exp %256 : vector<8x64xf32>
    %cst_67 = arith.constant 1.000000e+00 : f32
    %258 = vector.broadcast %cst_67 : f32 to vector<8x64xf32>
    %259 = arith.addf %258, %257 : vector<8x64xf32>
    %cst_68 = arith.constant 1.000000e+00 : f32
    %260 = vector.broadcast %cst_68 : f32 to vector<8x64xf32>
    %261 = arith.divf %260, %259 : vector<8x64xf32>
    %262 = vector.extract_strided_slice %248 {offsets = [0, 64], sizes = [8, 64], strides = [1, 1]} : vector<8x192xf32> to vector<8x64xf32>
    %263 = vector.extract_strided_slice %251 {offsets = [0, 64], sizes = [8, 64], strides = [1, 1]} : vector<8x192xf32> to vector<8x64xf32>
    %264 = arith.addf %262, %263 : vector<8x64xf32>
    %cst_69 = arith.constant 0.000000e+00 : f32
    %265 = vector.broadcast %cst_69 : f32 to vector<8x64xf32>
    %266 = arith.subf %265, %264 : vector<8x64xf32>
    %267 = math.exp %266 : vector<8x64xf32>
    %cst_70 = arith.constant 1.000000e+00 : f32
    %268 = vector.broadcast %cst_70 : f32 to vector<8x64xf32>
    %269 = arith.addf %268, %267 : vector<8x64xf32>
    %cst_71 = arith.constant 1.000000e+00 : f32
    %270 = vector.broadcast %cst_71 : f32 to vector<8x64xf32>
    %271 = arith.divf %270, %269 : vector<8x64xf32>
    %272 = vector.extract_strided_slice %248 {offsets = [0, 128], sizes = [8, 64], strides = [1, 1]} : vector<8x192xf32> to vector<8x64xf32>
    %273 = vector.extract_strided_slice %251 {offsets = [0, 128], sizes = [8, 64], strides = [1, 1]} : vector<8x192xf32> to vector<8x64xf32>
    %274 = arith.mulf %261, %273 : vector<8x64xf32>
    %275 = arith.addf %272, %274 : vector<8x64xf32>
    %276 = math.tanh %275 : vector<8x64xf32>
    %cst_72 = arith.constant 1.000000e+00 : f32
    %277 = vector.broadcast %cst_72 : f32 to vector<8x64xf32>
    %278 = arith.subf %277, %271 : vector<8x64xf32>
    %279 = arith.mulf %278, %276 : vector<8x64xf32>
    %280 = arith.mulf %271, %206 : vector<8x64xf32>
    %281 = arith.addf %279, %280 : vector<8x64xf32>
    %cst_73 = arith.constant dense<0.000000e+00> : vector<8x4xf32>
    %282 = tpu.matmul %281, %5, %cst_73 {dimension_numbers = #tpu.dot_dimension_numbers<[1], [0], [0], [1], [0, 0, 1, 1], [], []>} : vector<8x64xf32>, vector<64x4xf32>, vector<8x4xf32> -> vector<8x4xf32>
    %283 = vector.broadcast %6 : vector<1x4xf32> to vector<8x4xf32>
    %284 = arith.addf %282, %283 : vector<8x4xf32>
    %285 = vector.extract_strided_slice %284 {offsets = [0, 0], sizes = [8, 2], strides = [1, 1]} : vector<8x4xf32> to vector<8x2xf32>
    %286 = vector.extract_strided_slice %284 {offsets = [0, 2], sizes = [8, 2], strides = [1, 1]} : vector<8x4xf32> to vector<8x2xf32>
    %cst_74 = arith.constant 0.000000e+00 : f32
    %287 = vector.broadcast %cst_74 : f32 to vector<8x2xf32>
    %288 = arith.maximumf %286, %287 : vector<8x2xf32>
    %289 = math.absf %286 : vector<8x2xf32>
    %cst_75 = arith.constant 0.000000e+00 : f32
    %290 = vector.broadcast %cst_75 : f32 to vector<8x2xf32>
    %291 = arith.subf %290, %289 : vector<8x2xf32>
    %292 = math.exp %291 : vector<8x2xf32>
    %cst_76 = arith.constant 1.000000e+00 : f32
    %293 = vector.broadcast %cst_76 : f32 to vector<8x2xf32>
    %294 = arith.addf %293, %292 : vector<8x2xf32>
    %295 = math.log %294 : vector<8x2xf32>
    %296 = arith.addf %288, %295 : vector<8x2xf32>
    %cst_77 = arith.constant 1.000000e-03 : f32
    %297 = vector.broadcast %cst_77 : f32 to vector<8x2xf32>
    %298 = arith.addf %296, %297 : vector<8x2xf32>
    %299 = arith.addf %226, %285 : vector<8x2xf32>
    %300 = arith.mulf %298, %235 : vector<8x2xf32>
    %301 = arith.addf %299, %300 : vector<8x2xf32>
    %302 = math.log %298 : vector<8x2xf32>
    %cst_78 = arith.constant dense<0.000000e+00> : vector<8xf32>
    %303 = vector.multi_reduction <add>, %302, %cst_78 [1] : vector<8x2xf32> to vector<8xf32>
    %304 = vector.shape_cast %303 : vector<8xf32> to vector<8x1xf32>
    %305 = arith.addf %230, %304 : vector<8x1xf32>
    %306 = arith.mulf %235, %235 : vector<8x2xf32>
    %cst_79 = arith.constant dense<0.000000e+00> : vector<8xf32>
    %307 = vector.multi_reduction <add>, %306, %cst_79 [1] : vector<8x2xf32> to vector<8xf32>
    %308 = vector.shape_cast %307 : vector<8xf32> to vector<8x1xf32>
    %309 = arith.addf %234, %308 : vector<8x1xf32>
    %310 = tpu.concatenate %76, %151, %226, %301 in 1 : vector<8x2xf32>, vector<8x2xf32>, vector<8x2xf32>, vector<8x2xf32> -> vector<8x8xf32>
    %c0_80 = arith.constant 0 : index
    %c0_81 = arith.constant 0 : index
    %311 = vector.load %arg8[%c0_80, %c0_81] : memref<8x8xf32, #tpu.memory_space<vmem>>, vector<8x8xf32>
    tpu.vector_store %arg8[%c0_80, %c0_81], %310 {strides = array<i32>} : memref<8x8xf32, #tpu.memory_space<vmem>>, vector<8x8xf32>,
    %cst_82 = arith.constant -5.000000e-01 : f32
    %312 = vector.broadcast %cst_82 : f32 to vector<8x1xf32>
    %313 = arith.mulf %312, %309 : vector<8x1xf32>
    %cst_83 = arith.constant 7.35150814 : f32
    %314 = vector.broadcast %cst_83 : f32 to vector<8x1xf32>
    %315 = arith.subf %313, %314 : vector<8x1xf32>
    %316 = arith.subf %315, %305 : vector<8x1xf32>
    %c0_84 = arith.constant 0 : index
    %c0_85 = arith.constant 0 : index
    %317 = vector.load %arg9[%c0_84, %c0_85] : memref<8x1xf32, #tpu.memory_space<vmem>>, vector<8x1xf32>
    tpu.vector_store %arg9[%c0_84, %c0_85], %316 {strides = array<i32>} : memref<8x1xf32, #tpu.memory_space<vmem>>, vector<8x1xf32>,
    return
  }
}

</mosaic_0001>

<llo_original>
// kernel: tpu_custom_call.1
$region0: #{tpu_custom_call.1}
  #allocation0 [shape = 'u32[]', space=smem, size = 0x4, offset = 0x4, fixed_abs, tag = 'smem constant byte address 0x4 - core index']
  #allocation1 [shape = 'u32[144,128]{1,0:T(1,128)}', space=vmem, size = 0x12000, scoped, tag = 'internal scratch']
  %s0 = inlined_call_operand.vmem [shape: f32[8,8], index: 0, kind: input, shape index: {}]
  %s1 = inlined_call_operand.vmem [shape: f32[8,64], index: 1, kind: input, shape index: {}]
  %s2 = inlined_call_operand.vmem [shape: f32[2,192], index: 2, kind: input, shape index: {}]
  %s3 = inlined_call_operand.hbm [shape: f32[64,192], index: 3, kind: input, shape index: {}]
  %s4 = inlined_call_operand.vmem [shape: f32[1,192], index: 4, kind: input, shape index: {}]
  %s5 = inlined_call_operand.vmem [shape: f32[1,192], index: 5, kind: input, shape index: {}]
  %s6 = inlined_call_operand.vmem [shape: f32[64,4], index: 6, kind: input, shape index: {}]
  %s7 = inlined_call_operand.vmem [shape: f32[1,4], index: 7, kind: input, shape index: {}]
  %s8 = inlined_call_operand.hbm [shape: f32[8,8], index: 8, kind: output, shape index: {0}]
  %s9 = inlined_call_operand.vmem [shape: f32[8,1], index: 9, kind: output, shape index: {1}]
  %10 = xla_tuple %s8, %s9
  %s11 = sld [smem:[#allocation0]]
  $region54: #{tpu_custom_call.1} parent=0
    _
  %s13 = ssub.s32 1, %s11
  %s14 = scalar_select 0, %s13, %s11
  $region1: #{tpu_custom_call.1} parent=0
    #allocation2 [shape = 'u8[65536]{0}', space=vmem, size = 0x10000, scoped, tag = 'input window, operand 3, single buffered']
    #allocation3 [shape = 's32[1]{0}', space=sflag, size = 0x4, scoped, tag = 'scoped memory for tpu_custom_call.1']
    #allocation4 [shape = 's32[1]{0}', space=sflag, size = 0x4, scoped, tag = 'scoped memory for tpu_custom_call.1']
    #allocation5 [shape = 'u8[4096]{0}', space=vmem, size = 0x1000, scoped, tag = 'output window, operand 0, single buffered']
    %15 = vsyncpa [#allocation3], 0
    %16 = vsyncpa [#allocation4], 0
    // Predicated region
    $region2: #{tpu_custom_call.1} parent=1 // pred_check
      _
    $region3: #{tpu_custom_call.1} parent=1 // pred_check_branch
      %18 = sbr.rel (0) target = $region5
    $region4: #{tpu_custom_call.1} parent=1 // pred_region
      _
    $region5: #{tpu_custom_call.1} parent=1 // pred_fallthru
      _
    // Predicated region
    $region6: #{tpu_custom_call.1} parent=1 // pred_check
      _
    $region7: #{tpu_custom_call.1} parent=1 // pred_check_branch
      %20 = sbr.rel (0) target = $region9
    $region8: #{tpu_custom_call.1} parent=1 // pred_region
      _
    $region9: #{tpu_custom_call.1} parent=1 // pred_fallthru
      _
    // Predicated region
    $region10: #{tpu_custom_call.1} parent=1 // pred_check
      _
    $region11: #{tpu_custom_call.1} parent=1 // pred_check_branch
      %22 = sbr.rel (0) target = $region13
    $region12: #{tpu_custom_call.1} parent=1 // pred_region
      _
    $region13: #{tpu_custom_call.1} parent=1 // pred_fallthru
      _
    // Predicated region
    $region14: #{tpu_custom_call.1} parent=1 // pred_check
      _
    $region15: #{tpu_custom_call.1} parent=1 // pred_check_branch
      %24 = sbr.rel (0) target = $region17
    $region16: #{tpu_custom_call.1} parent=1 // pred_region
      %s26 = ssub.s32 2048, 2048
      %27 = vsyncadd [#allocation3], %s26
      %s28 = sshll.u32 [#allocation2], 4
      %s29 = int_to_ptr.vmem [resolvable:$true] %s28
      %34 = dma.hbm_to_vmem [thread:$0]  %s3, 2048, %s29, [#allocation3], 256, 256, 16
    $region17: #{tpu_custom_call.1} parent=1 // pred_fallthru
      _
    // Predicated region
    $region18: #{tpu_custom_call.1} parent=1 // pred_check
      _
    $region19: #{tpu_custom_call.1} parent=1 // pred_check_branch
      %36 = sbr.rel (0) target = $region21
    $region20: #{tpu_custom_call.1} parent=1 // pred_region
      _
    $region21: #{tpu_custom_call.1} parent=1 // pred_fallthru
      _
    // Predicated region
    $region22: #{tpu_custom_call.1} parent=1 // pred_check
      _
    $region23: #{tpu_custom_call.1} parent=1 // pred_check_branch
      %38 = sbr.rel (0) target = $region25
    $region24: #{tpu_custom_call.1} parent=1 // pred_region
      _
    $region25: #{tpu_custom_call.1} parent=1 // pred_fallthru
      _
    // Predicated region
    $region26: #{tpu_custom_call.1} parent=1 // pred_check
      _
    $region27: #{tpu_custom_call.1} parent=1 // pred_check_branch
      %40 = sbr.rel (0) target = $region29
    $region28: #{tpu_custom_call.1} parent=1 // pred_region
      _
    $region29: #{tpu_custom_call.1} parent=1 // pred_fallthru
      _
    // Predicated region
    $region30: #{tpu_custom_call.1} parent=1 // pred_check
      _
    $region31: #{tpu_custom_call.1} parent=1 // pred_check_branch
      %42 = sbr.rel (0) target = $region33
    $region32: #{tpu_custom_call.1} parent=1 // pred_region
      _
    $region33: #{tpu_custom_call.1} parent=1 // pred_fallthru
      _
    // Predicated region
    $region34: #{tpu_custom_call.1} parent=1 // pred_check
      _
    $region35: #{tpu_custom_call.1} parent=1 // pred_check_branch
      %44 = sbr.rel (0) target = $region37
    $region36: #{tpu_custom_call.1} parent=1 // pred_region
      %45 = dma.done [#allocation3], 2048
    $region37: #{tpu_custom_call.1} parent=1 // pred_fallthru
      _
    %v46 = vld [vmem:[%s1] sm:$0xff]
    %v47 = vld [vmem:[%s2] sm:$0xf]
    %v48 = vld [vmem:[#allocation2] sm:$0xff]
    %v49 = vld [vmem:[#allocation2 + $0x8] sm:$0xff]
    %v50 = vld [vmem:[#allocation2 + $0x10] sm:$0xff]
    %v51 = vld [vmem:[#allocation2 + $0x18] sm:$0xff]
    %v52 = vld [vmem:[#allocation2 + $0x20] sm:$0xff]
    %v53 = vld [vmem:[#allocation2 + $0x28] sm:$0xff]
    %v54 = vld [vmem:[#allocation2 + $0x30] sm:$0xff]
    %v55 = vld [vmem:[#allocation2 + $0x38] sm:$0xff]
    %v56 = vld [vmem:[#allocation2 + $0x40] sm:$0xff]
    %v57 = vld [vmem:[#allocation2 + $0x48] sm:$0xff]
    %v58 = vld [vmem:[#allocation2 + $0x50] sm:$0xff]
    %v59 = vld [vmem:[#allocation2 + $0x58] sm:$0xff]
    %v60 = vld [vmem:[#allocation2 + $0x60] sm:$0xff]
    %v61 = vld [vmem:[#allocation2 + $0x68] sm:$0xff]
    %v62 = vld [vmem:[#allocation2 + $0x70] sm:$0xff]
    %v63 = vld [vmem:[#allocation2 + $0x78] sm:$0xff]
    %v64 = vld [vmem:[%s4] sm:$0x3]
    %v65 = vld [vmem:[%s5] sm:$0x3]
    %v66 = vld [vmem:[%s6] sm:$0xff]
    %v67 = vld [vmem:[%s6 + $0x8] sm:$0xff]
    %v68 = vld [vmem:[%s6 + $0x10] sm:$0xff]
    %v69 = vld [vmem:[%s6 + $0x18] sm:$0xff]
    %v70 = vld [vmem:[%s6 + $0x20] sm:$0xff]
    %v71 = vld [vmem:[%s6 + $0x28] sm:$0xff]
    %v72 = vld [vmem:[%s6 + $0x30] sm:$0xff]
    %v73 = vld [vmem:[%s6 + $0x38] sm:$0xff]
    %v74 = vld [vmem:[%s7] sm:$0x1]
    %v75 = vld [vmem:[%s0] sm:$0xff]
    %v77 = vlaneseq
    %v78 = vshrl.u32 %v77, 7
    %v79 = vsub.s32 0, %v78
    %v80 = vrot.slane %v47, %v79
    %v81 = vlaneseq
    %v82 = vshrl.u32 %v81, 7
    %v83 = vsub.s32 2, %v82
    %v84 = vrot.slane %v47, %v83
    %v87 = vlaneseq
    %v88 = vshrl.u32 %v87, 7
    %v89 = vsub.s32 0, %v88
    %v90 = vrot.slane %v80, %v89
    %v91 = vlaneseq
    %v92 = vshrl.u32 %v91, 7
    %v93 = vsub.s32 0, %v92
    %v94 = vrot.slane %v84, %v93
    %v95 = vmul.f32 %v90, 0.0
    %v96 = vmul.f32 %v94, 0.0
    %v98 = vlaneseq
    %v99 = vshrl.u32 %v98, 7
    %v100 = vsub.s32 0, %v99
    %v101 = vrot.slane %v64, %v100
    %v102 = vlaneseq
    %v103 = vshrl.u32 %v102, 7
    %v104 = vsub.s32 1, %v103
    %v105 = vrot.slane %v64, %v104
    %v108 = vadd.f32 %v101, %v95
    %v109 = vadd.f32 %v105, %v96
    %v110 = vlaneseq
    %v111 = vshrl.u32 %v110, 7
    %v112 = vsub.s32 1, %v111
    %v113 = vrot.slane %v47, %v112
    %v114 = vlaneseq
    %v115 = vshrl.u32 %v114, 7
    %v116 = vsub.s32 3, %v115
    %v117 = vrot.slane %v47, %v116
    %v120 = vlaneseq
    %v121 = vshrl.u32 %v120, 7
    %v122 = vsub.s32 1, %v121
    %v123 = vrot.slane %v113, %v122
    %v124 = vlaneseq
    %v125 = vshrl.u32 %v124, 7
    %v126 = vsub.s32 1, %v125
    %v127 = vrot.slane %v117, %v126
    %v128 = vmul.f32 %v123, 0.0
    %v129 = vmul.f32 %v127, 0.0
    %v130 = vadd.f32 %v108, %v128
    %v131 = vadd.f32 %v109, %v129
    %v133 = vlaneseq
    %v134 = vshrl.u32 %v133, 7
    %v135 = vsub.s32 0, %v134
    %v136 = vrot.slane %v65, %v135
    %v137 = vlaneseq
    %v138 = vshrl.u32 %v137, 7
    %v139 = vsub.s32 1, %v138
    %v140 = vrot.slane %v65, %v139
    %vm143 = vcmask 523264
    %v145 = vsel %vm143, %v46, 0
    %147 = vmatprep.subr.mxu0 0.0
    %148 = vmatpush1.msra.mxu0 0.0
    %149 = vmatprep.subr.mxu0 0.0
    %150 = vmatpush1.msra.mxu0 0.0
    %151 = vmatprep.subr.mxu0 0.0
    %152 = vmatpush1.msra.mxu0 0.0
    %153 = vmatprep.subr.mxu0 0.0
    %154 = vmatpush1.msra.mxu0 0.0
    %155 = vmatprep.subr.mxu0 0.0
    %156 = vmatpush1.msra.mxu0 0.0
    %157 = vmatprep.subr.mxu0 0.0
    %158 = vmatpush1.msra.mxu0 0.0
    %159 = vmatprep.subr.mxu0 0.0
    %160 = vmatpush1.msra.mxu0 0.0
    %161 = vmatprep.subr.mxu0 0.0
    %162 = vmatpush1.msra.mxu0 0.0
    %163 = vmatprep.subr.mxu0 %v63
    %164 = vmatpush1.msra.mxu0 %v62
    %165 = vmatprep.subr.mxu0 %v61
    %166 = vmatpush1.msra.mxu0 %v60
    %167 = vmatprep.subr.mxu0 %v59
    %168 = vmatpush1.msra.mxu0 %v58
    %169 = vmatprep.subr.mxu0 %v57
    %170 = vmatpush1.msra.mxu0 %v56
    %171 = vmatprep.subr.mxu0 %v55
    %172 = vmatpush1.msra.mxu0 %v54
    %173 = vmatprep.subr.mxu0 %v53
    %174 = vmatpush1.msra.mxu0 %v52
    %175 = vmatprep.subr.mxu0 %v51
    %176 = vmatpush1.msra.mxu0 %v50
    %177 = vmatprep.subr.mxu0 %v49
    %178 = vmatpush1.msra.mxu0 %v48
    %179 = vmatprep.subr.mxu0 0.0
    %180 = vmatpush2.msra.mxu0 0.0
    %181 = vmatprep.subr.mxu0 0.0
    %182 = vmatpush2.msra.mxu0 0.0
    %183 = vmatprep.subr.mxu0 0.0
    %184 = vmatpush2.msra.mxu0 0.0
    %185 = vmatprep.subr.mxu0 0.0
    %186 = vmatpush2.msra.mxu0 0.0
    %187 = vmatprep.subr.mxu0 0.0
    %188 = vmatpush2.msra.mxu0 0.0
    %189 = vmatprep.subr.mxu0 0.0
    %190 = vmatpush2.msra.mxu0 0.0
    %191 = vmatprep.subr.mxu0 0.0
    %192 = vmatpush2.msra.mxu0 0.0
    %193 = vmatprep.subr.mxu0 0.0
    %194 = vmatpush2.msra.mxu0 0.0
    %195 = vmatprep.subr.mxu0 0.0
    %196 = vmatpush2.msra.mxu0 0.0
    %197 = vmatprep.subr.mxu0 0.0
    %198 = vmatpush2.msra.mxu0 0.0
    %199 = vmatprep.subr.mxu0 0.0
    %200 = vmatpush2.msra.mxu0 0.0
    %201 = vmatprep.subr.mxu0 0.0
    %202 = vmatpush2.msra.mxu0 0.0
    %203 = vmatprep.subr.mxu0 0.0
    %204 = vmatpush2.msra.mxu0 0.0
    %205 = vmatprep.subr.mxu0 0.0
    %206 = vmatpush2.msra.mxu0 0.0
    %207 = vmatprep.subr.mxu0 0.0
    %208 = vmatpush2.msra.mxu0 0.0
    %209 = vmatprep.subr.mxu0 0.0
    %210 = vmatpush2.msra.mxu0 0.0
    %211 = vmatprep.mubr.f32.mxu0 0.0
    %212 = vmatmul.mubr.f32.gmra.mxu0 %v145
    %v213 = vpop.f32.mrf.mxu0
    %v214 = vadd.f32 %v136, %v213
    %v215 = vpop.f32.mrf.mxu0
    %v216 = vadd.f32 %v140, %v215
    %217 = vdwg.mxu0
    %v218 = vadd.f32 %v130, %v214
    %v219 = vsub.f32 0.0, %v218
    %v220 = vmul.f32 %v219, 1.442695
    %v221 = vpow.pop %v220
    %v222 = vadd.f32 %v221, 1.0
    %v223 = vrcp.pop %v222
    %v224 = vmul.f32 1.0, %v223
    %v225 = vmul.f32 %v224, %v216
    %v226 = vadd.f32 %v131, %v225
    %v227 = vtanh.pop %v226
    %v228 = vsub.f32 1.0, %v224
    %230 = vrot.lane.b32.xlu0 %v227, 64
    %v231 = vpop.permute.xlu0 %230
    %v233 = vmul.f32 %v228, %v231
    %234 = vrot.lane.b32.xlu0 %v46, 64
    %v235 = vpop.permute.xlu0 %234
    %v237 = vmul.f32 %v224, %v235
    %v238 = vadd.f32 %v233, %v237
    %v240 = vlaneseq
    %v241 = vshrl.u32 %v240, 7
    %v242 = vsub.s32 0, %v241
    %v243 = vrot.slane %v74, %v242
    %246 = vrot.lane.b32.xlu0 %v238, 64
    %v247 = vpop.permute.xlu0 %246
    %v248 = vsel %vm143, %v247, 0
    %250 = vmatprep.subr.mxu0 0.0
    %251 = vmatpush1.msra.mxu0 0.0
    %252 = vmatprep.subr.mxu0 0.0
    %253 = vmatpush1.msra.mxu0 0.0
    %254 = vmatprep.subr.mxu0 0.0
    %255 = vmatpush1.msra.mxu0 0.0
    %256 = vmatprep.subr.mxu0 0.0
    %257 = vmatpush1.msra.mxu0 0.0
    %258 = vmatprep.subr.mxu0 0.0
    %259 = vmatpush1.msra.mxu0 0.0
    %260 = vmatprep.subr.mxu0 0.0
    %261 = vmatpush1.msra.mxu0 0.0
    %262 = vmatprep.subr.mxu0 0.0
    %263 = vmatpush1.msra.mxu0 0.0
    %264 = vmatprep.subr.mxu0 0.0
    %265 = vmatpush1.msra.mxu0 0.0
    %266 = vmatprep.subr.mxu0 0.0
    %267 = vmatpush1.msra.mxu0 %v73
    %268 = vmatprep.subr.mxu0 0.0
    %269 = vmatpush1.msra.mxu0 %v72
    %270 = vmatprep.subr.mxu0 0.0
    %271 = vmatpush1.msra.mxu0 %v71
    %272 = vmatprep.subr.mxu0 0.0
    %273 = vmatpush1.msra.mxu0 %v70
    %274 = vmatprep.subr.mxu0 0.0
    %275 = vmatpush1.msra.mxu0 %v69
    %276 = vmatprep.subr.mxu0 0.0
    %277 = vmatpush1.msra.mxu0 %v68
    %278 = vmatprep.subr.mxu0 0.0
    %279 = vmatpush1.msra.mxu0 %v67
    %280 = vmatprep.subr.mxu0 0.0
    %281 = vmatpush1.msra.mxu0 %v66
    %282 = vmatprep.subr.mxu0 0.0
    %283 = vmatpush2.msra.mxu0 0.0
    %284 = vmatprep.subr.mxu0 0.0
    %285 = vmatpush2.msra.mxu0 0.0
    %286 = vmatprep.subr.mxu0 0.0
    %287 = vmatpush2.msra.mxu0 0.0
    %288 = vmatprep.subr.mxu0 0.0
    %289 = vmatpush2.msra.mxu0 0.0
    %290 = vmatprep.subr.mxu0 0.0
    %291 = vmatpush2.msra.mxu0 0.0
    %292 = vmatprep.subr.mxu0 0.0
    %293 = vmatpush2.msra.mxu0 0.0
    %294 = vmatprep.subr.mxu0 0.0
    %295 = vmatpush2.msra.mxu0 0.0
    %296 = vmatprep.subr.mxu0 0.0
    %297 = vmatpush2.msra.mxu0 0.0
    %298 = vmatprep.subr.mxu0 0.0
    %299 = vmatpush2.msra.mxu0 0.0
    %300 = vmatprep.subr.mxu0 0.0
    %301 = vmatpush2.msra.mxu0 0.0
    %302 = vmatprep.subr.mxu0 0.0
    %303 = vmatpush2.msra.mxu0 0.0
    %304 = vmatprep.subr.mxu0 0.0
    %305 = vmatpush2.msra.mxu0 0.0
    %306 = vmatprep.subr.mxu0 0.0
    %307 = vmatpush2.msra.mxu0 0.0
    %308 = vmatprep.subr.mxu0 0.0
    %309 = vmatpush2.msra.mxu0 0.0
    %310 = vmatprep.subr.mxu0 0.0
    %311 = vmatpush2.msra.mxu0 0.0
    %312 = vmatprep.subr.mxu0 0.0
    %313 = vmatpush2.msra.mxu0 0.0
    %314 = vmatprep.mubr.f32.mxu0 0.0
    %315 = vmatmul.mubr.f32.gmra.mxu0 %v248
    %v316 = vpop.f32.mrf.mxu0
    %v317 = vadd.f32 %v243, %v316
    %v318 = vpop.f32.mrf.mxu0
    %319 = vdwg.mxu0
    %v320 = vmax.f32 %v317, 0.0
    %v321 = vand.u32 2147483647, %v317
    %v322 = vsub.f32 0.0, %v321
    %v323 = vmul.f32 %v322, 1.442695
    %v324 = vpow.pop %v323
    %v325 = vadd.f32 %v324, 1.0
    %v326 = vlog2.pop %v325
    %v327 = vmul.f32 %v326, 0.6931472
    %v328 = vadd.f32 %v320, %v327
    %v329 = vadd.f32 %v328, 0.001
    %v330 = vadd.f32 %v317, 0.0
    %332 = vrot.lane.b32.xlu0 %v75, 2
    %v333 = vpop.permute.xlu0 %332
    %v335 = vmul.f32 %v329, %v333
    %337 = vrot.lane.b32.xlu0 %v335, 126
    %v338 = vpop.permute.xlu0 %337
    %v340 = vadd.f32 %v330, %v338
    %v341 = vlog2.pop %v329
    %v342 = vmul.f32 %v341, 0.6931472
    %344 = vrot.lane.b32.xlu0 %v342, 126
    %v345 = vpop.permute.xlu0 %344
    %vm347 = vcmask 15360
    %v348 = vsel %vm347, %v345, 0.0
    %349 = vadd.xlane.f32.xlu0 %v348
    %v350 = vpop.xlane.xlu0 %349
    %v351 = vadd.f32 %v350, 0.0
    %v352 = vmul.f32 %v75, %v75
    %v353 = vsel %vm347, %v352, 0.0
    %354 = vadd.xlane.f32.xlu0 %v353
    %v355 = vpop.xlane.xlu0 %354
    %v356 = vadd.f32 %v355, 0.0
    %358 = vset.pattern.permute.xlu0 0
    %359 = vperm.xlu0 %358, %v340
    %v360 = vpop.permute.xlu0 %359
    %v362 = vmul.f32 %v360, %v90
    %v363 = vmul.f32 %v360, %v94
    %v364 = vadd.f32 %v101, %v362
    %v365 = vadd.f32 %v105, %v363
    %366 = vset.pattern.permute.xlu0 1
    %367 = vperm.xlu0 %366, %v340
    %v368 = vpop.permute.xlu0 %367
    %v370 = vmul.f32 %v368, %v123
    %v371 = vmul.f32 %v368, %v127
    %v372 = vadd.f32 %v364, %v370
    %v373 = vadd.f32 %v365, %v371
    %374 = vmatprep.subr.mxu0 0.0
    %375 = vmatpush1.msra.mxu0 0.0
    %376 = vmatprep.subr.mxu0 0.0
    %377 = vmatpush1.msra.mxu0 0.0
    %378 = vmatprep.subr.mxu0 0.0
    %379 = vmatpush1.msra.mxu0 0.0
    %380 = vmatprep.subr.mxu0 0.0
    %381 = vmatpush1.msra.mxu0 0.0
    %382 = vmatprep.subr.mxu0 0.0
    %383 = vmatpush1.msra.mxu0 0.0
    %384 = vmatprep.subr.mxu0 0.0
    %385 = vmatpush1.msra.mxu0 0.0
    %386 = vmatprep.subr.mxu0 0.0
    %387 = vmatpush1.msra.mxu0 0.0
    %388 = vmatprep.subr.mxu0 0.0
    %389 = vmatpush1.msra.mxu0 0.0
    %390 = vmatprep.subr.mxu0 %v63
    %391 = vmatpush1.msra.mxu0 %v62
    %392 = vmatprep.subr.mxu0 %v61
    %393 = vmatpush1.msra.mxu0 %v60
    %394 = vmatprep.subr.mxu0 %v59
    %395 = vmatpush1.msra.mxu0 %v58
    %396 = vmatprep.subr.mxu0 %v57
    %397 = vmatpush1.msra.mxu0 %v56
    %398 = vmatprep.subr.mxu0 %v55
    %399 = vmatpush1.msra.mxu0 %v54
    %400 = vmatprep.subr.mxu0 %v53
    %401 = vmatpush1.msra.mxu0 %v52
    %402 = vmatprep.subr.mxu0 %v51
    %403 = vmatpush1.msra.mxu0 %v50
    %404 = vmatprep.subr.mxu0 %v49
    %405 = vmatpush1.msra.mxu0 %v48
    %406 = vmatprep.subr.mxu0 0.0
    %407 = vmatpush2.msra.mxu0 0.0
    %408 = vmatprep.subr.mxu0 0.0
    %409 = vmatpush2.msra.mxu0 0.0
    %410 = vmatprep.subr.mxu0 0.0
    %411 = vmatpush2.msra.mxu0 0.0
    %412 = vmatprep.subr.mxu0 0.0
    %413 = vmatpush2.msra.mxu0 0.0
    %414 = vmatprep.subr.mxu0 0.0
    %415 = vmatpush2.msra.mxu0 0.0
    %416 = vmatprep.subr.mxu0 0.0
    %417 = vmatpush2.msra.mxu0 0.0
    %418 = vmatprep.subr.mxu0 0.0
    %419 = vmatpush2.msra.mxu0 0.0
    %420 = vmatprep.subr.mxu0 0.0
    %421 = vmatpush2.msra.mxu0 0.0
    %422 = vmatprep.subr.mxu0 0.0
    %423 = vmatpush2.msra.mxu0 0.0
    %424 = vmatprep.subr.mxu0 0.0
    %425 = vmatpush2.msra.mxu0 0.0
    %426 = vmatprep.subr.mxu0 0.0
    %427 = vmatpush2.msra.mxu0 0.0
    %428 = vmatprep.subr.mxu0 0.0
    %429 = vmatpush2.msra.mxu0 0.0
    %430 = vmatprep.subr.mxu0 0.0
    %431 = vmatpush2.msra.mxu0 0.0
    %432 = vmatprep.subr.mxu0 0.0
    %433 = vmatpush2.msra.mxu0 0.0
    %434 = vmatprep.subr.mxu0 0.0
    %435 = vmatpush2.msra.mxu0 0.0
    %436 = vmatprep.subr.mxu0 0.0
    %437 = vmatpush2.msra.mxu0 0.0
    %438 = vmatprep.mubr.f32.mxu0 0.0
    %439 = vmatmul.mubr.f32.gmra.mxu0 %v248
    %v440 = vpop.f32.mrf.mxu0
    %v441 = vadd.f32 %v136, %v440
    %v442 = vpop.f32.mrf.mxu0
    %v443 = vadd.f32 %v140, %v442
    %444 = vdwg.mxu0
    %v445 = vadd.f32 %v372, %v441
    %v446 = vsub.f32 0.0, %v445
    %v447 = vmul.f32 %v446, 1.442695
    %v448 = vpow.pop %v447
    %v449 = vadd.f32 %v448, 1.0
    %v450 = vrcp.pop %v449
    %v451 = vmul.f32 1.0, %v450
    %v452 = vmul.f32 %v451, %v443
    %v453 = vadd.f32 %v373, %v452
    %v454 = vtanh.pop %v453
    %v455 = vsub.f32 1.0, %v451
    %457 = vrot.lane.b32.xlu0 %v454, 64
    %v458 = vpop.permute.xlu0 %457
    %v460 = vmul.f32 %v455, %v458
    %v461 = vmul.f32 %v451, %v238
    %v462 = vadd.f32 %v460, %v461
    %464 = vrot.lane.b32.xlu0 %v462, 64
    %v465 = vpop.permute.xlu0 %464
    %v466 = vsel %vm143, %v465, 0
    %468 = vmatprep.subr.mxu0 0.0
    %469 = vmatpush1.msra.mxu0 0.0
    %470 = vmatprep.subr.mxu0 0.0
    %471 = vmatpush1.msra.mxu0 0.0
    %472 = vmatprep.subr.mxu0 0.0
    %473 = vmatpush1.msra.mxu0 0.0
    %474 = vmatprep.subr.mxu0 0.0
    %475 = vmatpush1.msra.mxu0 0.0
    %476 = vmatprep.subr.mxu0 0.0
    %477 = vmatpush1.msra.mxu0 0.0
    %478 = vmatprep.subr.mxu0 0.0
    %479 = vmatpush1.msra.mxu0 0.0
    %480 = vmatprep.subr.mxu0 0.0
    %481 = vmatpush1.msra.mxu0 0.0
    %482 = vmatprep.subr.mxu0 0.0
    %483 = vmatpush1.msra.mxu0 0.0
    %484 = vmatprep.subr.mxu0 0.0
    %485 = vmatpush1.msra.mxu0 %v73
    %486 = vmatprep.subr.mxu0 0.0
    %487 = vmatpush1.msra.mxu0 %v72
    %488 = vmatprep.subr.mxu0 0.0
    %489 = vmatpush1.msra.mxu0 %v71
    %490 = vmatprep.subr.mxu0 0.0
    %491 = vmatpush1.msra.mxu0 %v70
    %492 = vmatprep.subr.mxu0 0.0
    %493 = vmatpush1.msra.mxu0 %v69
    %494 = vmatprep.subr.mxu0 0.0
    %495 = vmatpush1.msra.mxu0 %v68
    %496 = vmatprep.subr.mxu0 0.0
    %497 = vmatpush1.msra.mxu0 %v67
    %498 = vmatprep.subr.mxu0 0.0
    %499 = vmatpush1.msra.mxu0 %v66
    %500 = vmatprep.subr.mxu0 0.0
    %501 = vmatpush2.msra.mxu0 0.0
    %502 = vmatprep.subr.mxu0 0.0
    %503 = vmatpush2.msra.mxu0 0.0
    %504 = vmatprep.subr.mxu0 0.0
    %505 = vmatpush2.msra.mxu0 0.0
    %506 = vmatprep.subr.mxu0 0.0
    %507 = vmatpush2.msra.mxu0 0.0
    %508 = vmatprep.subr.mxu0 0.0
    %509 = vmatpush2.msra.mxu0 0.0
    %510 = vmatprep.subr.mxu0 0.0
    %511 = vmatpush2.msra.mxu0 0.0
    %512 = vmatprep.subr.mxu0 0.0
    %513 = vmatpush2.msra.mxu0 0.0
    %514 = vmatprep.subr.mxu0 0.0
    %515 = vmatpush2.msra.mxu0 0.0
    %516 = vmatprep.subr.mxu0 0.0
    %517 = vmatpush2.msra.mxu0 0.0
    %518 = vmatprep.subr.mxu0 0.0
    %519 = vmatpush2.msra.mxu0 0.0
    %520 = vmatprep.subr.mxu0 0.0
    %521 = vmatpush2.msra.mxu0 0.0
    %522 = vmatprep.subr.mxu0 0.0
    %523 = vmatpush2.msra.mxu0 0.0
    %524 = vmatprep.subr.mxu0 0.0
    %525 = vmatpush2.msra.mxu0 0.0
    %526 = vmatprep.subr.mxu0 0.0
    %527 = vmatpush2.msra.mxu0 0.0
    %528 = vmatprep.subr.mxu0 0.0
    %529 = vmatpush2.msra.mxu0 0.0
    %530 = vmatprep.subr.mxu0 0.0
    %531 = vmatpush2.msra.mxu0 0.0
    %532 = vmatprep.mubr.f32.mxu0 0.0
    %533 = vmatmul.mubr.f32.gmra.mxu0 %v466
    %v534 = vpop.f32.mrf.mxu0
    %v535 = vadd.f32 %v243, %v534
    %v536 = vpop.f32.mrf.mxu0
    %537 = vdwg.mxu0
    %v538 = vmax.f32 %v535, 0.0
    %v539 = vand.u32 2147483647, %v535
    %v540 = vsub.f32 0.0, %v539
    %v541 = vmul.f32 %v540, 1.442695
    %v542 = vpow.pop %v541
    %v543 = vadd.f32 %v542, 1.0
    %v544 = vlog2.pop %v543
    %v545 = vmul.f32 %v544, 0.6931472
    %v546 = vadd.f32 %v538, %v545
    %v547 = vadd.f32 %v546, 0.001
    %v548 = vadd.f32 %v340, %v535
    %v549 = vmul.f32 %v547, %v75
    %551 = vrot.lane.b32.xlu0 %v549, 126
    %v552 = vpop.permute.xlu0 %551
    %v554 = vadd.f32 %v548, %v552
    %v555 = vlog2.pop %v547
    %v556 = vmul.f32 %v555, 0.6931472
    %558 = vrot.lane.b32.xlu0 %v556, 126
    %v559 = vpop.permute.xlu0 %558
    %v561 = vsel %vm347, %v559, 0.0
    %562 = vadd.xlane.f32.xlu0 %v561
    %v563 = vpop.xlane.xlu0 %562
    %v564 = vadd.f32 %v351, %v563
    %566 = vrot.lane.b32.xlu0 %v352, 126
    %v567 = vpop.permute.xlu0 %566
    %v569 = vsel %vm347, %v567, 0.0
    %570 = vadd.xlane.f32.xlu0 %v569
    %v571 = vpop.xlane.xlu0 %570
    %v572 = vadd.f32 %v356, %v571
    %574 = vset.pattern.permute.xlu0 0
    %575 = vperm.xlu0 %574, %v554
    %v576 = vpop.permute.xlu0 %575
    %v578 = vmul.f32 %v576, %v90
    %v579 = vmul.f32 %v576, %v94
    %v580 = vadd.f32 %v101, %v578
    %v581 = vadd.f32 %v105, %v579
    %582 = vset.pattern.permute.xlu0 1
    %583 = vperm.xlu0 %582, %v554
    %v584 = vpop.permute.xlu0 %583
    %v586 = vmul.f32 %v584, %v123
    %v587 = vmul.f32 %v584, %v127
    %v588 = vadd.f32 %v580, %v586
    %v589 = vadd.f32 %v581, %v587
    %590 = vmatprep.subr.mxu0 0.0
    %591 = vmatpush1.msra.mxu0 0.0
    %592 = vmatprep.subr.mxu0 0.0
    %593 = vmatpush1.msra.mxu0 0.0
    %594 = vmatprep.subr.mxu0 0.0
    %595 = vmatpush1.msra.mxu0 0.0
    %596 = vmatprep.subr.mxu0 0.0
    %597 = vmatpush1.msra.mxu0 0.0
    %598 = vmatprep.subr.mxu0 0.0
    %599 = vmatpush1.msra.mxu0 0.0
    %600 = vmatprep.subr.mxu0 0.0
    %601 = vmatpush1.msra.mxu0 0.0
    %602 = vmatprep.subr.mxu0 0.0
    %603 = vmatpush1.msra.mxu0 0.0
    %604 = vmatprep.subr.mxu0 0.0
    %605 = vmatpush1.msra.mxu0 0.0
    %606 = vmatprep.subr.mxu0 %v63
    %607 = vmatpush1.msra.mxu0 %v62
    %608 = vmatprep.subr.mxu0 %v61
    %609 = vmatpush1.msra.mxu0 %v60
    %610 = vmatprep.subr.mxu0 %v59
    %611 = vmatpush1.msra.mxu0 %v58
    %612 = vmatprep.subr.mxu0 %v57
    %613 = vmatpush1.msra.mxu0 %v56
    %614 = vmatprep.subr.mxu0 %v55
    %615 = vmatpush1.msra.mxu0 %v54
    %616 = vmatprep.subr.mxu0 %v53
    %617 = vmatpush1.msra.mxu0 %v52
    %618 = vmatprep.subr.mxu0 %v51
    %619 = vmatpush1.msra.mxu0 %v50
    %620 = vmatprep.subr.mxu0 %v49
    %621 = vmatpush1.msra.mxu0 %v48
    %622 = vmatprep.subr.mxu0 0.0
    %623 = vmatpush2.msra.mxu0 0.0
    %624 = vmatprep.subr.mxu0 0.0
    %625 = vmatpush2.msra.mxu0 0.0
    %626 = vmatprep.subr.mxu0 0.0
    %627 = vmatpush2.msra.mxu0 0.0
    %628 = vmatprep.subr.mxu0 0.0
    %629 = vmatpush2.msra.mxu0 0.0
    %630 = vmatprep.subr.mxu0 0.0
    %631 = vmatpush2.msra.mxu0 0.0
    %632 = vmatprep.subr.mxu0 0.0
    %633 = vmatpush2.msra.mxu0 0.0
    %634 = vmatprep.subr.mxu0 0.0
    %635 = vmatpush2.msra.mxu0 0.0
    %636 = vmatprep.subr.mxu0 0.0
    %637 = vmatpush2.msra.mxu0 0.0
    %638 = vmatprep.subr.mxu0 0.0
    %639 = vmatpush2.msra.mxu0 0.0
    %640 = vmatprep.subr.mxu0 0.0
    %641 = vmatpush2.msra.mxu0 0.0
    %642 = vmatprep.subr.mxu0 0.0
    %643 = vmatpush2.msra.mxu0 0.0
    %644 = vmatprep.subr.mxu0 0.0
    %645 = vmatpush2.msra.mxu0 0.0
    %646 = vmatprep.subr.mxu0 0.0
    %647 = vmatpush2.msra.mxu0 0.0
    %648 = vmatprep.subr.mxu0 0.0
    %649 = vmatpush2.msra.mxu0 0.0
    %650 = vmatprep.subr.mxu0 0.0
    %651 = vmatpush2.msra.mxu0 0.0
    %652 = vmatprep.subr.mxu0 0.0
    %653 = vmatpush2.msra.mxu0 0.0
    %654 = vmatprep.mubr.f32.mxu0 0.0
    %655 = vmatmul.mubr.f32.gmra.mxu0 %v466
    %v656 = vpop.f32.mrf.mxu0
    %v657 = vadd.f32 %v136, %v656
    %v658 = vpop.f32.mrf.mxu0
    %v659 = vadd.f32 %v140, %v658
    %660 = vdwg.mxu0
    %v661 = vadd.f32 %v588, %v657
    %v662 = vsub.f32 0.0, %v661
    %v663 = vmul.f32 %v662, 1.442695
    %v664 = vpow.pop %v663
    %v665 = vadd.f32 %v664, 1.0
    %v666 = vrcp.pop %v665
    %v667 = vmul.f32 1.0, %v666
    %v668 = vmul.f32 %v667, %v659
    %v669 = vadd.f32 %v589, %v668
    %v670 = vtanh.pop %v669
    %v671 = vsub.f32 1.0, %v667
    %673 = vrot.lane.b32.xlu0 %v670, 64
    %v674 = vpop.permute.xlu0 %673
    %v676 = vmul.f32 %v671, %v674
    %v677 = vmul.f32 %v667, %v462
    %v678 = vadd.f32 %v676, %v677
    %680 = vrot.lane.b32.xlu0 %v678, 64
    %v681 = vpop.permute.xlu0 %680
    %v682 = vsel %vm143, %v681, 0
    %684 = vmatprep.subr.mxu0 0.0
    %685 = vmatpush1.msra.mxu0 0.0
    %686 = vmatprep.subr.mxu0 0.0
    %687 = vmatpush1.msra.mxu0 0.0
    %688 = vmatprep.subr.mxu0 0.0
    %689 = vmatpush1.msra.mxu0 0.0
    %690 = vmatprep.subr.mxu0 0.0
    %691 = vmatpush1.msra.mxu0 0.0
    %692 = vmatprep.subr.mxu0 0.0
    %693 = vmatpush1.msra.mxu0 0.0
    %694 = vmatprep.subr.mxu0 0.0
    %695 = vmatpush1.msra.mxu0 0.0
    %696 = vmatprep.subr.mxu0 0.0
    %697 = vmatpush1.msra.mxu0 0.0
    %698 = vmatprep.subr.mxu0 0.0
    %699 = vmatpush1.msra.mxu0 0.0
    %700 = vmatprep.subr.mxu0 0.0
    %701 = vmatpush1.msra.mxu0 %v73
    %702 = vmatprep.subr.mxu0 0.0
    %703 = vmatpush1.msra.mxu0 %v72
    %704 = vmatprep.subr.mxu0 0.0
    %705 = vmatpush1.msra.mxu0 %v71
    %706 = vmatprep.subr.mxu0 0.0
    %707 = vmatpush1.msra.mxu0 %v70
    %708 = vmatprep.subr.mxu0 0.0
    %709 = vmatpush1.msra.mxu0 %v69
    %710 = vmatprep.subr.mxu0 0.0
    %711 = vmatpush1.msra.mxu0 %v68
    %712 = vmatprep.subr.mxu0 0.0
    %713 = vmatpush1.msra.mxu0 %v67
    %714 = vmatprep.subr.mxu0 0.0
    %715 = vmatpush1.msra.mxu0 %v66
    %716 = vmatprep.subr.mxu0 0.0
    %717 = vmatpush2.msra.mxu0 0.0
    %718 = vmatprep.subr.mxu0 0.0
    %719 = vmatpush2.msra.mxu0 0.0
    %720 = vmatprep.subr.mxu0 0.0
    %721 = vmatpush2.msra.mxu0 0.0
    %722 = vmatprep.subr.mxu0 0.0
    %723 = vmatpush2.msra.mxu0 0.0
    %724 = vmatprep.subr.mxu0 0.0
    %725 = vmatpush2.msra.mxu0 0.0
    %726 = vmatprep.subr.mxu0 0.0
    %727 = vmatpush2.msra.mxu0 0.0
    %728 = vmatprep.subr.mxu0 0.0
    %729 = vmatpush2.msra.mxu0 0.0
    %730 = vmatprep.subr.mxu0 0.0
    %731 = vmatpush2.msra.mxu0 0.0
    %732 = vmatprep.subr.mxu0 0.0
    %733 = vmatpush2.msra.mxu0 0.0
    %734 = vmatprep.subr.mxu0 0.0
    %735 = vmatpush2.msra.mxu0 0.0
    %736 = vmatprep.subr.mxu0 0.0
    %737 = vmatpush2.msra.mxu0 0.0
    %738 = vmatprep.subr.mxu0 0.0
    %739 = vmatpush2.msra.mxu0 0.0
    %740 = vmatprep.subr.mxu0 0.0
    %741 = vmatpush2.msra.mxu0 0.0
    %742 = vmatprep.subr.mxu0 0.0
    %743 = vmatpush2.msra.mxu0 0.0
    %744 = vmatprep.subr.mxu0 0.0
    %745 = vmatpush2.msra.mxu0 0.0
    %746 = vmatprep.subr.mxu0 0.0
    %747 = vmatpush2.msra.mxu0 0.0
    %748 = vmatprep.mubr.f32.mxu0 0.0
    %749 = vmatmul.mubr.f32.gmra.mxu0 %v682
    %v750 = vpop.f32.mrf.mxu0
    %v751 = vadd.f32 %v243, %v750
    %v752 = vpop.f32.mrf.mxu0
    %753 = vdwg.mxu0
    %v754 = vmax.f32 %v751, 0.0
    %v755 = vand.u32 2147483647, %v751
    %v756 = vsub.f32 0.0, %v755
    %v757 = vmul.f32 %v756, 1.442695
    %v758 = vpow.pop %v757
    %v759 = vadd.f32 %v758, 1.0
    %v760 = vlog2.pop %v759
    %v761 = vmul.f32 %v760, 0.6931472
    %v762 = vadd.f32 %v754, %v761
    %v763 = vadd.f32 %v762, 0.001
    %v764 = vadd.f32 %v554, %v751
    %765 = vrot.lane.b32.xlu0 %v75, 126
    %v766 = vpop.permute.xlu0 %765
    %v768 = vmul.f32 %v763, %v766
    %770 = vrot.lane.b32.xlu0 %v768, 126
    %v771 = vpop.permute.xlu0 %770
    %v773 = vadd.f32 %v764, %v771
    %v774 = vlog2.pop %v763
    %v775 = vmul.f32 %v774, 0.6931472
    %777 = vrot.lane.b32.xlu0 %v775, 126
    %v778 = vpop.permute.xlu0 %777
    %v780 = vsel %vm347, %v778, 0.0
    %781 = vadd.xlane.f32.xlu0 %v780
    %v782 = vpop.xlane.xlu0 %781
    %v783 = vadd.f32 %v564, %v782
    %784 = vrot.lane.b32.xlu0 %v352, 124
    %v785 = vpop.permute.xlu0 %784
    %v787 = vsel %vm347, %v785, 0.0
    %788 = vadd.xlane.f32.xlu0 %v787
    %v789 = vpop.xlane.xlu0 %788
    %v790 = vadd.f32 %v572, %v789
    %792 = vset.pattern.permute.xlu0 0
    %793 = vperm.xlu0 %792, %v773
    %v794 = vpop.permute.xlu0 %793
    %v796 = vmul.f32 %v794, %v90
    %v797 = vmul.f32 %v794, %v94
    %v798 = vadd.f32 %v101, %v796
    %v799 = vadd.f32 %v105, %v797
    %800 = vset.pattern.permute.xlu0 1
    %801 = vperm.xlu0 %800, %v773
    %v802 = vpop.permute.xlu0 %801
    %v804 = vmul.f32 %v802, %v123
    %v805 = vmul.f32 %v802, %v127
    %v806 = vadd.f32 %v798, %v804
    %v807 = vadd.f32 %v799, %v805
    %808 = vmatprep.subr.mxu0 0.0
    %809 = vmatpush1.msra.mxu0 0.0
    %810 = vmatprep.subr.mxu0 0.0
    %811 = vmatpush1.msra.mxu0 0.0
    %812 = vmatprep.subr.mxu0 0.0
    %813 = vmatpush1.msra.mxu0 0.0
    %814 = vmatprep.subr.mxu0 0.0
    %815 = vmatpush1.msra.mxu0 0.0
    %816 = vmatprep.subr.mxu0 0.0
    %817 = vmatpush1.msra.mxu0 0.0
    %818 = vmatprep.subr.mxu0 0.0
    %819 = vmatpush1.msra.mxu0 0.0
    %820 = vmatprep.subr.mxu0 0.0
    %821 = vmatpush1.msra.mxu0 0.0
    %822 = vmatprep.subr.mxu0 0.0
    %823 = vmatpush1.msra.mxu0 0.0
    %824 = vmatprep.subr.mxu0 %v63
    %825 = vmatpush1.msra.mxu0 %v62
    %826 = vmatprep.subr.mxu0 %v61
    %827 = vmatpush1.msra.mxu0 %v60
    %828 = vmatprep.subr.mxu0 %v59
    %829 = vmatpush1.msra.mxu0 %v58
    %830 = vmatprep.subr.mxu0 %v57
    %831 = vmatpush1.msra.mxu0 %v56
    %832 = vmatprep.subr.mxu0 %v55
    %833 = vmatpush1.msra.mxu0 %v54
    %834 = vmatprep.subr.mxu0 %v53
    %835 = vmatpush1.msra.mxu0 %v52
    %836 = vmatprep.subr.mxu0 %v51
    %837 = vmatpush1.msra.mxu0 %v50
    %838 = vmatprep.subr.mxu0 %v49
    %839 = vmatpush1.msra.mxu0 %v48
    %840 = vmatprep.subr.mxu0 0.0
    %841 = vmatpush2.msra.mxu0 0.0
    %842 = vmatprep.subr.mxu0 0.0
    %843 = vmatpush2.msra.mxu0 0.0
    %844 = vmatprep.subr.mxu0 0.0
    %845 = vmatpush2.msra.mxu0 0.0
    %846 = vmatprep.subr.mxu0 0.0
    %847 = vmatpush2.msra.mxu0 0.0
    %848 = vmatprep.subr.mxu0 0.0
    %849 = vmatpush2.msra.mxu0 0.0
    %850 = vmatprep.subr.mxu0 0.0
    %851 = vmatpush2.msra.mxu0 0.0
    %852 = vmatprep.subr.mxu0 0.0
    %853 = vmatpush2.msra.mxu0 0.0
    %854 = vmatprep.subr.mxu0 0.0
    %855 = vmatpush2.msra.mxu0 0.0
    %856 = vmatprep.subr.mxu0 0.0
    %857 = vmatpush2.msra.mxu0 0.0
    %858 = vmatprep.subr.mxu0 0.0
    %859 = vmatpush2.msra.mxu0 0.0
    %860 = vmatprep.subr.mxu0 0.0
    %861 = vmatpush2.msra.mxu0 0.0
    %862 = vmatprep.subr.mxu0 0.0
    %863 = vmatpush2.msra.mxu0 0.0
    %864 = vmatprep.subr.mxu0 0.0
    %865 = vmatpush2.msra.mxu0 0.0
    %866 = vmatprep.subr.mxu0 0.0
    %867 = vmatpush2.msra.mxu0 0.0
    %868 = vmatprep.subr.mxu0 0.0
    %869 = vmatpush2.msra.mxu0 0.0
    %870 = vmatprep.subr.mxu0 0.0
    %871 = vmatpush2.msra.mxu0 0.0
    %872 = vmatprep.mubr.f32.mxu0 0.0
    %873 = vmatmul.mubr.f32.gmra.mxu0 %v682
    %v874 = vpop.f32.mrf.mxu0
    %v875 = vadd.f32 %v136, %v874
    %v876 = vpop.f32.mrf.mxu0
    %v877 = vadd.f32 %v140, %v876
    %878 = vdwg.mxu0
    %v879 = vadd.f32 %v806, %v875
    %v880 = vsub.f32 0.0, %v879
    %v881 = vmul.f32 %v880, 1.442695
    %v882 = vpow.pop %v881
    %v883 = vadd.f32 %v882, 1.0
    %v884 = vrcp.pop %v883
    %v885 = vmul.f32 1.0, %v884
    %v886 = vmul.f32 %v885, %v877
    %v887 = vadd.f32 %v807, %v886
    %v888 = vtanh.pop %v887
    %v889 = vsub.f32 1.0, %v885
    %891 = vrot.lane.b32.xlu0 %v888, 64
    %v892 = vpop.permute.xlu0 %891
    %v894 = vmul.f32 %v889, %v892
    %v895 = vmul.f32 %v885, %v678
    %v896 = vadd.f32 %v894, %v895
    %898 = vrot.lane.b32.xlu0 %v896, 64
    %v899 = vpop.permute.xlu0 %898
    %v900 = vsel %vm143, %v899, 0
    %902 = vmatprep.subr.mxu0 0.0
    %903 = vmatpush1.msra.mxu0 0.0
    %904 = vmatprep.subr.mxu0 0.0
    %905 = vmatpush1.msra.mxu0 0.0
    %906 = vmatprep.subr.mxu0 0.0
    %907 = vmatpush1.msra.mxu0 0.0
    %908 = vmatprep.subr.mxu0 0.0
    %909 = vmatpush1.msra.mxu0 0.0
    %910 = vmatprep.subr.mxu0 0.0
    %911 = vmatpush1.msra.mxu0 0.0
    %912 = vmatprep.subr.mxu0 0.0
    %913 = vmatpush1.msra.mxu0 0.0
    %914 = vmatprep.subr.mxu0 0.0
    %915 = vmatpush1.msra.mxu0 0.0
    %916 = vmatprep.subr.mxu0 0.0
    %917 = vmatpush1.msra.mxu0 0.0
    %918 = vmatprep.subr.mxu0 0.0
    %919 = vmatpush1.msra.mxu0 %v73
    %920 = vmatprep.subr.mxu0 0.0
    %921 = vmatpush1.msra.mxu0 %v72
    %922 = vmatprep.subr.mxu0 0.0
    %923 = vmatpush1.msra.mxu0 %v71
    %924 = vmatprep.subr.mxu0 0.0
    %925 = vmatpush1.msra.mxu0 %v70
    %926 = vmatprep.subr.mxu0 0.0
    %927 = vmatpush1.msra.mxu0 %v69
    %928 = vmatprep.subr.mxu0 0.0
    %929 = vmatpush1.msra.mxu0 %v68
    %930 = vmatprep.subr.mxu0 0.0
    %931 = vmatpush1.msra.mxu0 %v67
    %932 = vmatprep.subr.mxu0 0.0
    %933 = vmatpush1.msra.mxu0 %v66
    %934 = vmatprep.subr.mxu0 0.0
    %935 = vmatpush2.msra.mxu0 0.0
    %936 = vmatprep.subr.mxu0 0.0
    %937 = vmatpush2.msra.mxu0 0.0
    %938 = vmatprep.subr.mxu0 0.0
    %939 = vmatpush2.msra.mxu0 0.0
    %940 = vmatprep.subr.mxu0 0.0
    %941 = vmatpush2.msra.mxu0 0.0
    %942 = vmatprep.subr.mxu0 0.0
    %943 = vmatpush2.msra.mxu0 0.0
    %944 = vmatprep.subr.mxu0 0.0
    %945 = vmatpush2.msra.mxu0 0.0
    %946 = vmatprep.subr.mxu0 0.0
    %947 = vmatpush2.msra.mxu0 0.0
    %948 = vmatprep.subr.mxu0 0.0
    %949 = vmatpush2.msra.mxu0 0.0
    %950 = vmatprep.subr.mxu0 0.0
    %951 = vmatpush2.msra.mxu0 0.0
    %952 = vmatprep.subr.mxu0 0.0
    %953 = vmatpush2.msra.mxu0 0.0
    %954 = vmatprep.subr.mxu0 0.0
    %955 = vmatpush2.msra.mxu0 0.0
    %956 = vmatprep.subr.mxu0 0.0
    %957 = vmatpush2.msra.mxu0 0.0
    %958 = vmatprep.subr.mxu0 0.0
    %959 = vmatpush2.msra.mxu0 0.0
    %960 = vmatprep.subr.mxu0 0.0
    %961 = vmatpush2.msra.mxu0 0.0
    %962 = vmatprep.subr.mxu0 0.0
    %963 = vmatpush2.msra.mxu0 0.0
    %964 = vmatprep.subr.mxu0 0.0
    %965 = vmatpush2.msra.mxu0 0.0
    %966 = vmatprep.mubr.f32.mxu0 0.0
    %967 = vmatmul.mubr.f32.gmra.mxu0 %v900
    %v968 = vpop.f32.mrf.mxu0
    %v969 = vadd.f32 %v243, %v968
    %v970 = vpop.f32.mrf.mxu0
    %971 = vdwg.mxu0
    %v972 = vmax.f32 %v969, 0.0
    %v973 = vand.u32 2147483647, %v969
    %v974 = vsub.f32 0.0, %v973
    %v975 = vmul.f32 %v974, 1.442695
    %v976 = vpow.pop %v975
    %v977 = vadd.f32 %v976, 1.0
    %v978 = vlog2.pop %v977
    %v979 = vmul.f32 %v978, 0.6931472
    %v980 = vadd.f32 %v972, %v979
    %v981 = vadd.f32 %v980, 0.001
    %v982 = vadd.f32 %v773, %v969
    %983 = vrot.lane.b32.xlu0 %v75, 124
    %v984 = vpop.permute.xlu0 %983
    %v986 = vmul.f32 %v981, %v984
    %988 = vrot.lane.b32.xlu0 %v986, 126
    %v989 = vpop.permute.xlu0 %988
    %v991 = vadd.f32 %v982, %v989
    %v992 = vlog2.pop %v981
    %v993 = vmul.f32 %v992, 0.6931472
    %995 = vrot.lane.b32.xlu0 %v993, 126
    %v996 = vpop.permute.xlu0 %995
    %v998 = vsel %vm347, %v996, 0.0
    %999 = vadd.xlane.f32.xlu0 %v998
    %v1000 = vpop.xlane.xlu0 %999
    %v1001 = vadd.f32 %v783, %v1000
    %1002 = vrot.lane.b32.xlu0 %v352, 122
    %v1003 = vpop.permute.xlu0 %1002
    %v1005 = vsel %vm347, %v1003, 0.0
    %1006 = vadd.xlane.f32.xlu0 %v1005
    %v1007 = vpop.xlane.xlu0 %1006
    %v1008 = vadd.f32 %v790, %v1007
    %1009 = vrot.lane.b32.xlu0 %v554, 2
    %v1010 = vpop.permute.xlu0 %1009
    %1012 = vrot.lane.b32.xlu0 %v773, 4
    %v1013 = vpop.permute.xlu0 %1012
    %1016 = vrot.lane.b32.xlu0 %v991, 6
    %v1017 = vpop.permute.xlu0 %1016
    %v1019 = vsel %vm347, %v340, %v1010
    %vm1020 = vcmask 31744
    %v1021 = vsel %vm1020, %v1019, %v1013
    %vm1022 = vcmask 48128
    %v1023 = vsel %vm1022, %v1021, %v1017
    %vm1024 = vcmask 64512
    %1025 = vst.msk [vmem:[#allocation5] sm:$0xff] %vm1024, %v1023
    %v1026 = vmul.f32 %v1008, -0.5
    %v1027 = vsub.f32 %v1026, 7.351508
    %v1028 = vsub.f32 %v1027, %v1001
    %vm1029 = vcmask 7168
    %1030 = vst.msk [vmem:[%s9] sm:$0xff] %vm1029, %v1028
    // Predicated region
    $region38: #{tpu_custom_call.1} parent=1 // pred_check
      _
    $region39: #{tpu_custom_call.1} parent=1 // pred_check_branch
      %1032 = sbr.rel (0) target = $region41
    $region40: #{tpu_custom_call.1} parent=1 // pred_region
      %s1034 = ssub.s32 128, 128
      %1035 = vsyncadd [#allocation4], %s1034
      %s1037 = sshll.u32 [#allocation5], 4
      %s1038 = int_to_ptr.vmem [resolvable:$true] %s1037
      %1040 = dma.vmem_to_hbm [thread:$0]  %s1038, 128, %s8, [#allocation4]
    $region41: #{tpu_custom_call.1} parent=1 // pred_fallthru
      _
    // Predicated region
    $region42: #{tpu_custom_call.1} parent=1 // pred_check
      _
    $region43: #{tpu_custom_call.1} parent=1 // pred_check_branch
      %1042 = sbr.rel (0) target = $region45
    $region44: #{tpu_custom_call.1} parent=1 // pred_region
      _
    $region45: #{tpu_custom_call.1} parent=1 // pred_fallthru
      _
    // Predicated region
    $region46: #{tpu_custom_call.1} parent=1 // pred_check
      _
    $region47: #{tpu_custom_call.1} parent=1 // pred_check_branch
      %1044 = sbr.rel (0) target = $region49
    $region48: #{tpu_custom_call.1} parent=1 // pred_region
      %1045 = dma.done [#allocation4], 128
    $region49: #{tpu_custom_call.1} parent=1 // pred_fallthru
      _
    // Predicated region
    $region50: #{tpu_custom_call.1} parent=1 // pred_check
      _
    $region51: #{tpu_custom_call.1} parent=1 // pred_check_branch
      %1047 = sbr.rel (0) target = $region53
    $region52: #{tpu_custom_call.1} parent=1 // pred_region
      _
    $region53: #{tpu_custom_call.1} parent=1 // pred_fallthru
      _
    %1048 = vsyncpa [#allocation3], 1
    %1049 = vsyncpa [#allocation4], 1

</llo_original>
